<compile_context>
chip_gen: v7x
topology: tpu7x:2x2x1
jax: 0.10.0
libtpu: 0.0.40
codegen_flags: <defaults>
</compile_context>

<pallas_src>
import functools

import jax
import jax.numpy as jnp
from jax.experimental import pallas as pl
from jax.experimental.pallas import tpu as pltpu


# ----------------------------- in-kernel helpers -----------------------------

def _layernorm(x, gamma, beta, eps=1e-5):
    x = x.astype(jnp.float32)
    mu = jnp.mean(x, axis=-1, keepdims=True)
    var = jnp.mean((x - mu) ** 2, axis=-1, keepdims=True)
    return (x - mu) * jax.lax.rsqrt(var + eps) * gamma + beta


def _gelu(x):
    # TODO(synk): PyTorch nn.GELU default is the exact erf form; the tanh
    # approximation is used here for robust Mosaic lowering (~1e-3 divergence).
    c = jnp.float32(0.7978845608028654)  # sqrt(2/pi)
    return 0.5 * x * (1.0 + jnp.tanh(c * (x + 0.044715 * x * x * x)))


# --------------------------------- kernel ------------------------------------

def _vit_kernel(x0_ref,
                ln1g_ref, ln1b_ref, wqkv_ref, wo_ref, bo_ref,
                ln2g_ref, ln2b_ref, w1_ref, b1_ref, w2_ref, b2_ref,
                hg_ref, hb_ref, hw_ref, hbias_ref,
                o_ref, x_ref,
                *, images, heads, dim_head):
    layer = pl.program_id(1)
    last = pl.num_programs(1) - 1
    inner = heads * dim_head

    # Layer 0: initialize the resident activation from the wrapper-computed
    # patch-embed (+cls+pos) slab for this batch tile.
    @pl.when(layer == 0)
    def _init():
        x_ref[...] = x0_ref[...]

    for bt in range(images):                      # small, unrolled at trace time
        x = x_ref[bt]                             # (N, D) f32

        # ---- attention (per image): x += softmax(q k^T / sqrt(dh)) v Wo ----
        h = _layernorm(x, ln1g_ref[0], ln1b_ref[0]).astype(jnp.bfloat16)
        qkv = jnp.dot(h, wqkv_ref[0],
                      preferred_element_type=jnp.float32)      # (N, 3*inner)
        ctx = []
        for hh in range(heads):                   # small, unrolled
            q = qkv[:, hh * dim_head:(hh + 1) * dim_head].astype(jnp.bfloat16)
            k = qkv[:, inner + hh * dim_head:
                       inner + (hh + 1) * dim_head].astype(jnp.bfloat16)
            v = qkv[:, 2 * inner + hh * dim_head:
                       2 * inner + (hh + 1) * dim_head].astype(jnp.bfloat16)
            s = jax.lax.dot_general(q, k, (((1,), (1,)), ((), ())),
                                    preferred_element_type=jnp.float32)  # (N, N)
            # TODO(synk): on v6e/v7x the softmax elementwise math could run in
            # bf16 for ~2x VPU/EUP throughput; kept f32 (v5e-safe, accurate).
            s = s - jnp.max(s, axis=-1, keepdims=True)
            p = jnp.exp(s)
            a = p * pl.reciprocal(jnp.sum(p, axis=-1, keepdims=True), approx=True)
            ctx.append(jnp.dot(a.astype(jnp.bfloat16), v,
                               preferred_element_type=jnp.float32))       # (N, dh)
        ctx = jnp.concatenate(ctx, axis=-1).astype(jnp.bfloat16)          # (N, inner)
        x = x + jnp.dot(ctx, wo_ref[0],
                        preferred_element_type=jnp.float32) + bo_ref[0]

        # ---- feed-forward: x += W2 gelu(W1 LN(x)) ----
        h2 = _layernorm(x, ln2g_ref[0], ln2b_ref[0]).astype(jnp.bfloat16)
        z = jnp.dot(h2, w1_ref[0], preferred_element_type=jnp.float32) + b1_ref[0]
        z = _gelu(z).astype(jnp.bfloat16)
        x = x + jnp.dot(z, w2_ref[0], preferred_element_type=jnp.float32) + b2_ref[0]

        x_ref[bt] = x

    # ---- LayerNorm + Linear head on the cls rows (lane-padded classes) ----
    @pl.when(layer == last)
    def _head():
        cls_rows = x_ref[...][:, 0, :]            # (images, D); cls is row 0
        hc = _layernorm(cls_rows, hg_ref[...], hb_ref[...]).astype(jnp.bfloat16)
        o_ref[0] = (jnp.dot(hc, hw_ref[...], preferred_element_type=jnp.float32)
                    + hbias_ref[...])


# ------------------------------ parameter prep --------------------------------

def _stack_layer_params(layers, dim, heads, dim_head):
    """Stack per-layer params along a leading depth axis (lane-dense layouts)."""
    inner = heads * dim_head
    scale = float(dim_head) ** -0.5
    st = lambda name: jnp.stack([l[name] for l in layers], axis=0)

    wqkv = st("wqkv")                                 # (depth, D, 3*inner)
    wqkv = wqkv.at[:, :, :inner].multiply(scale)      # fold 1/sqrt(dh) into Q cols
    return dict(
        ln1_g=st("ln1_g"), ln1_b=st("ln1_b"),
        wqkv=wqkv.astype(jnp.bfloat16),
        wo=st("wo").astype(jnp.bfloat16),             # (depth, inner, D)
        bo=st("bo"),
        ln2_g=st("ln2_g"), ln2_b=st("ln2_b"),
        w1=st("w1").astype(jnp.bfloat16), b1=st("b1"),
        w2=st("w2").astype(jnp.bfloat16), b2=st("b2"),
    )


def init_vit_params(key, *, channels, patch, dim, depth, heads, mlp_dim,
                    num_patches, num_classes):
    inner = (dim // heads) * heads
    patch_dim = channels * patch * patch
    keys = iter(list(jax.random.split(key, 6 + 7 * depth)))
    nrm = lambda shape, s=0.02: jax.random.normal(next(keys), shape, jnp.float32) * s

    params = {
        "patch_w": nrm((patch_dim, dim)),
        "patch_b": nrm((1, dim)),
        "cls": nrm((1, dim), 1.0),
        "pos": nrm((num_patches + 1, dim), 1.0),
        "head_g": jnp.ones((1, dim), jnp.float32),
        "head_b": jnp.zeros((1, dim), jnp.float32),
        "head_w": nrm((dim, num_classes)),
        "head_bias": nrm((1, num_classes)),
        "layers": [],
    }
    for _ in range(depth):
        params["layers"].append({
            "ln1_g": jnp.ones((1, dim), jnp.float32),
            "ln1_b": jnp.zeros((1, dim), jnp.float32),
            "wqkv": nrm((dim, 3 * inner)),
            "wo": nrm((inner, dim)),
            "bo": nrm((1, dim)),
            "ln2_g": jnp.ones((1, dim), jnp.float32),
            "ln2_b": jnp.zeros((1, dim), jnp.float32),
            "w1": nrm((dim, mlp_dim)),
            "b1": nrm((1, mlp_dim)),
            "w2": nrm((mlp_dim, dim)),
            "b2": nrm((1, dim)),
        })
    return params


def _vmem_limit_bytes():
    # Explicit scoped-VMEM budget sized per generation (review item); default
    # scoped limits (16/32 MiB) are too small for realistic ViT residency.
    try:
        cap = pltpu.get_tpu_info().vmem_capacity_bytes
        return int(cap * 7 // 8)
    except Exception:
        return 56 * 1024 * 1024


# ---------------------------------- model --------------------------------------

def vit_forward(img, params, *, patch, heads, dim, batch_tile=None):
    # img: NCHW.  Non-overlapping patches in (channel, kh, kw) order, matching
    # nn.Conv2d(kernel=stride=patch) + flatten(2).transpose(1, 2).
    B, C, H, W = img.shape
    hp, wp = H // patch, W // patch
    P = hp * wp
    N = P + 1
    depth = len(params["layers"])
    dim_head = dim // heads
    num_classes = params["head_w"].shape[1]
    patch_dim = C * patch * patch

    if batch_tile is None:
        batch_tile = B          # 1 batch tile: per-layer weights fetched once/layer
    assert B % batch_tile == 0
    num_btiles = B // batch_tile

    # ---- patch embedding + cls token + positional embedding (XLA, one-off) ----
    patches = img.reshape(B, C, hp, patch, wp, patch)
    patches = patches.transpose(0, 2, 4, 1, 3, 5).reshape(B, P, patch_dim)
    emb = jnp.einsum("bpd,de->bpe", patches, params["patch_w"]) + params["patch_b"]
    cls = jnp.broadcast_to(params["cls"][None], (B, 1, dim))
    x0 = (jnp.concatenate([cls, emb], axis=1)
          + params["pos"][None, :N]).astype(jnp.float32)          # (B, N, D)
    # TODO(synk): nn.Dropout / emb_dropout are identity in eval mode (p=0) — omitted.

    stk = _stack_layer_params(params["layers"], dim, heads, dim_head)

    # Lane-dense head: pad classes to a multiple of 128 (sliced back below).
    c_pad = ((num_classes + 127) // 128) * 128
    head_w = jnp.pad(params["head_w"],
                     ((0, 0), (0, c_pad - num_classes))).astype(jnp.bfloat16)
    head_bias = jnp.pad(params["head_bias"], ((0, 0), (0, c_pad - num_classes)))

    kern = functools.partial(_vit_kernel, images=batch_tile, heads=heads,
                             dim_head=dim_head)

    def full(shape):
        nd = len(shape)
        return pl.BlockSpec(tuple(shape), lambda i, l, nd=nd: (0,) * nd)

    def per_layer(shape):
        nd = len(shape)
        return pl.BlockSpec((1,) + tuple(shape[1:]),
                            lambda i, l, nd=nd: (l,) + (0,) * (nd - 1))

    in_specs = [
        pl.BlockSpec((batch_tile, N, dim), lambda i, l: (i, 0, 0)),   # x0
        per_layer(stk["ln1_g"].shape), per_layer(stk["ln1_b"].shape),
        per_layer(stk["wqkv"].shape), per_layer(stk["wo"].shape),
        per_layer(stk["bo"].shape),
        per_layer(stk["ln2_g"].shape), per_layer(stk["ln2_b"].shape),
        per_layer(stk["w1"].shape), per_layer(stk["b1"].shape),
        per_layer(stk["w2"].shape), per_layer(stk["b2"].shape),
        full((1, dim)), full((1, dim)), full((dim, c_pad)), full((1, c_pad)),
    ]

    out = pl.pallas_call(
        kern,
        out_shape=jax.ShapeDtypeStruct((num_btiles, batch_tile, c_pad), jnp.float32),
        grid=(num_btiles, depth),
        in_specs=in_specs,
        out_specs=pl.BlockSpec((1, batch_tile, c_pad), lambda i, l: (i, 0, 0)),
        scratch_shapes=[pltpu.VMEM((batch_tile, N, dim), jnp.float32)],
        compiler_params=pltpu.CompilerParams(
            dimension_semantics=("parallel", "arbitrary"),
            vmem_limit_bytes=_vmem_limit_bytes()),
    )(x0, stk["ln1_g"], stk["ln1_b"], stk["wqkv"], stk["wo"], stk["bo"],
      stk["ln2_g"], stk["ln2_b"], stk["w1"], stk["b1"], stk["w2"], stk["b2"],
      params["head_g"], params["head_b"], head_w, head_bias)

    return out.reshape(B, c_pad)[:, :num_classes]


# ----------------------------------- main ---------------------------------------

if __name__ == "__main__":
    IMAGE, PATCH, CHANNELS = 16, 4, 3
    DIM, DEPTH, HEADS, MLP_DIM, NUM_CLASSES = 32, 2, 4, 64, 10
    BATCH = 2
    NUM_PATCHES = (IMAGE // PATCH) ** 2

    key = jax.random.PRNGKey(0)
    k_img, k_param = jax.random.split(key)
    img = jax.random.normal(k_img, (BATCH, CHANNELS, IMAGE, IMAGE), jnp.float32)

    params = init_vit_params(
        k_param, channels=CHANNELS, patch=PATCH, dim=DIM, depth=DEPTH,
        heads=HEADS, mlp_dim=MLP_DIM, num_patches=NUM_PATCHES,
        num_classes=NUM_CLASSES)

    # One image per grid tile: exercises the "parallel" batch-tile axis
    # (sharded across TensorCores on v7x) and per-image attention.
    out = vit_forward(img, params, patch=PATCH, heads=HEADS, dim=DIM,
                      batch_tile=1)
    out = jax.block_until_ready(out)
    assert out.shape == (BATCH, NUM_CLASSES), out.shape
    assert bool(jnp.all(jnp.isfinite(out)))
    print("KERNEL_OK")
</pallas_src>

<mosaic_0001>
module attributes {stable_mosaic.version = 11 : i64} {
  func.func @_vit_kernel(%arg0: i32, %arg1: i32, %arg2: memref<1x17x32xf32, #tpu.memory_space<vmem>>, %arg3: memref<1x1x32xf32, #tpu.memory_space<vmem>>, %arg4: memref<1x1x32xf32, #tpu.memory_space<vmem>>, %arg5: memref<1x32x96xbf16, #tpu.memory_space<vmem>>, %arg6: memref<1x32x32xbf16, #tpu.memory_space<vmem>>, %arg7: memref<1x1x32xf32, #tpu.memory_space<vmem>>, %arg8: memref<1x1x32xf32, #tpu.memory_space<vmem>>, %arg9: memref<1x1x32xf32, #tpu.memory_space<vmem>>, %arg10: memref<1x32x64xbf16, #tpu.memory_space<vmem>>, %arg11: memref<1x1x64xf32, #tpu.memory_space<vmem>>, %arg12: memref<1x64x32xbf16, #tpu.memory_space<vmem>>, %arg13: memref<1x1x32xf32, #tpu.memory_space<vmem>>, %arg14: memref<1x32xf32, #tpu.memory_space<vmem>>, %arg15: memref<1x32xf32, #tpu.memory_space<vmem>>, %arg16: memref<32x128xbf16, #tpu.memory_space<vmem>>, %arg17: memref<1x128xf32, #tpu.memory_space<vmem>>, %arg18: memref<1x1x128xf32, #tpu.memory_space<vmem>>, %arg19: memref<1x17x32xf32, #tpu.memory_space<vmem>>) attributes {dimension_semantics = [#tpu.dimension_semantics<parallel>, #tpu.dimension_semantics<arbitrary>], iteration_bounds = array<i64: 2, 2>, scalar_prefetch = 0 : i64, scratch_operands = 1 : i64, tpu.core_type = #tpu.core_type<tc>, window_params = [{transform_indices = @transform_0, window_bounds = array<i64: 1, 17, 32>}, {transform_indices = @transform_1, window_bounds = array<i64: 1, 1, 32>}, {transform_indices = @transform_2, window_bounds = array<i64: 1, 1, 32>}, {transform_indices = @transform_3, window_bounds = array<i64: 1, 32, 96>}, {transform_indices = @transform_4, window_bounds = array<i64: 1, 32, 32>}, {transform_indices = @transform_5, window_bounds = array<i64: 1, 1, 32>}, {transform_indices = @transform_6, window_bounds = array<i64: 1, 1, 32>}, {transform_indices = @transform_7, window_bounds = array<i64: 1, 1, 32>}, {transform_indices = @transform_8, window_bounds = array<i64: 1, 32, 64>}, {transform_indices = @transform_9, window_bounds = array<i64: 1, 1, 64>}, {transform_indices = @transform_10, window_bounds = array<i64: 1, 64, 32>}, {transform_indices = @transform_11, window_bounds = array<i64: 1, 1, 32>}, {pipeline_mode = #tpu.pipeline_mode<synchronous>, transform_indices = @transform_12, window_bounds = array<i64: 1, 32>}, {pipeline_mode = #tpu.pipeline_mode<synchronous>, transform_indices = @transform_13, window_bounds = array<i64: 1, 32>}, {pipeline_mode = #tpu.pipeline_mode<synchronous>, transform_indices = @transform_14, window_bounds = array<i64: 32, 128>}, {pipeline_mode = #tpu.pipeline_mode<synchronous>, transform_indices = @transform_15, window_bounds = array<i64: 1, 128>}, {transform_indices = @transform_16, window_bounds = array<i64: 1, 1, 128>}]} {
    %c0_i32 = arith.constant 0 : i32
    %0 = arith.cmpi eq, %arg1, %c0_i32 : i32
    %1 = arith.extui %0 : i1 to i32
    %c0_i32_0 = arith.constant 0 : i32
    %2 = arith.cmpi ne, %1, %c0_i32_0 : i32
    scf.if %2 {
      %c0_73 = arith.constant 0 : index
      %c0_74 = arith.constant 0 : index
      %c0_75 = arith.constant 0 : index
      %183 = vector.load %arg2[%c0_73, %c0_74, %c0_75] : memref<1x17x32xf32, #tpu.memory_space<vmem>>, vector<1x17x32xf32>
      %c0_76 = arith.constant 0 : index
      %c0_77 = arith.constant 0 : index
      %c0_78 = arith.constant 0 : index
      %184 = vector.load %arg19[%c0_76, %c0_77, %c0_78] : memref<1x17x32xf32, #tpu.memory_space<vmem>>, vector<1x17x32xf32>
      tpu.vector_store %arg19[%c0_76, %c0_77, %c0_78], %183 {strides = array<i32>} : memref<1x17x32xf32, #tpu.memory_space<vmem>>, vector<1x17x32xf32>,
    } else {
    }
    %c0 = arith.constant 0 : index
    %c0_1 = arith.constant 0 : index
    %c0_2 = arith.constant 0 : index
    %3 = vector.load %arg19[%c0, %c0_1, %c0_2] : memref<1x17x32xf32, #tpu.memory_space<vmem>>, vector<1x17x32xf32>
    %4 = vector.shape_cast %3 : vector<1x17x32xf32> to vector<17x32xf32>
    %c0_3 = arith.constant 0 : index
    %c0_4 = arith.constant 0 : index
    %c0_5 = arith.constant 0 : index
    %5 = vector.load %arg3[%c0_3, %c0_4, %c0_5] : memref<1x1x32xf32, #tpu.memory_space<vmem>>, vector<1x1x32xf32>
    %6 = vector.shape_cast %5 : vector<1x1x32xf32> to vector<1x32xf32>
    %c0_6 = arith.constant 0 : index
    %c0_7 = arith.constant 0 : index
    %c0_8 = arith.constant 0 : index
    %7 = vector.load %arg4[%c0_6, %c0_7, %c0_8] : memref<1x1x32xf32, #tpu.memory_space<vmem>>, vector<1x1x32xf32>
    %8 = vector.shape_cast %7 : vector<1x1x32xf32> to vector<1x32xf32>
    %cst = arith.constant dense<0.000000e+00> : vector<17xf32>
    %9 = vector.multi_reduction <add>, %4, %cst [1] : vector<17x32xf32> to vector<17xf32>
    %10 = vector.shape_cast %9 : vector<17xf32> to vector<17x1xf32>
    %cst_9 = arith.constant 3.200000e+01 : f32
    %11 = vector.broadcast %cst_9 : f32 to vector<17x1xf32>
    %12 = arith.divf %10, %11 : vector<17x1xf32>
    %13 = vector.broadcast %12 : vector<17x1xf32> to vector<17x32xf32>
    %14 = arith.subf %4, %13 : vector<17x32xf32>
    %15 = arith.mulf %14, %14 : vector<17x32xf32>
    %cst_10 = arith.constant dense<0.000000e+00> : vector<17xf32>
    %16 = vector.multi_reduction <add>, %15, %cst_10 [1] : vector<17x32xf32> to vector<17xf32>
    %17 = vector.shape_cast %16 : vector<17xf32> to vector<17x1xf32>
    %cst_11 = arith.constant 3.200000e+01 : f32
    %18 = vector.broadcast %cst_11 : f32 to vector<17x1xf32>
    %19 = arith.divf %17, %18 : vector<17x1xf32>
    %20 = vector.broadcast %12 : vector<17x1xf32> to vector<17x32xf32>
    %21 = arith.subf %4, %20 : vector<17x32xf32>
    %cst_12 = arith.constant 9.99999974E-6 : f32
    %22 = vector.broadcast %cst_12 : f32 to vector<17x1xf32>
    %23 = arith.addf %19, %22 : vector<17x1xf32>
    %24 = math.rsqrt %23 : vector<17x1xf32>
    %25 = vector.broadcast %24 : vector<17x1xf32> to vector<17x32xf32>
    %26 = arith.mulf %21, %25 : vector<17x32xf32>
    %27 = vector.broadcast %6 : vector<1x32xf32> to vector<17x32xf32>
    %28 = arith.mulf %26, %27 : vector<17x32xf32>
    %29 = vector.broadcast %8 : vector<1x32xf32> to vector<17x32xf32>
    %30 = arith.addf %28, %29 : vector<17x32xf32>
    %31 = arith.truncf %30 : vector<17x32xf32> to vector<17x32xbf16>
    %c0_13 = arith.constant 0 : index
    %c0_14 = arith.constant 0 : index
    %c0_15 = arith.constant 0 : index
    %32 = vector.load %arg5[%c0_13, %c0_14, %c0_15] : memref<1x32x96xbf16, #tpu.memory_space<vmem>>, vector<1x32x96xbf16>
    %33 = vector.shape_cast %32 : vector<1x32x96xbf16> to vector<32x96xbf16>
    %cst_16 = arith.constant dense<0.000000e+00> : vector<17x96xf32>
    %34 = tpu.matmul %31, %33, %cst_16 {dimension_numbers = #tpu.dot_dimension_numbers<[1], [0], [0], [1], [0, 0, 1, 1], [], []>} : vector<17x32xbf16>, vector<32x96xbf16>, vector<17x96xf32> -> vector<17x96xf32>
    %35 = vector.extract_strided_slice %34 {offsets = [0, 0], sizes = [17, 8], strides = [1, 1]} : vector<17x96xf32> to vector<17x8xf32>
    %36 = arith.truncf %35 : vector<17x8xf32> to vector<17x8xbf16>
    %37 = vector.extract_strided_slice %34 {offsets = [0, 32], sizes = [17, 8], strides = [1, 1]} : vector<17x96xf32> to vector<17x8xf32>
    %38 = arith.truncf %37 : vector<17x8xf32> to vector<17x8xbf16>
    %39 = vector.extract_strided_slice %34 {offsets = [0, 64], sizes = [17, 8], strides = [1, 1]} : vector<17x96xf32> to vector<17x8xf32>
    %40 = arith.truncf %39 : vector<17x8xf32> to vector<17x8xbf16>
    %cst_17 = arith.constant dense<0.000000e+00> : vector<17x17xf32>
    %41 = tpu.matmul %36, %38, %cst_17 {dimension_numbers = #tpu.dot_dimension_numbers<[1], [1], [0], [0], [0, 0, 1, 0], [], []>} : vector<17x8xbf16>, vector<17x8xbf16>, vector<17x17xf32> -> vector<17x17xf32>
    %cst_18 = arith.constant dense<0xFF800000> : vector<17xf32>
    %42 = vector.multi_reduction <maximumf>, %41, %cst_18 [1] : vector<17x17xf32> to vector<17xf32>
    %43 = vector.shape_cast %42 : vector<17xf32> to vector<17x1xf32>
    %44 = vector.broadcast %43 : vector<17x1xf32> to vector<17x17xf32>
    %45 = arith.subf %41, %44 : vector<17x17xf32>
    %46 = math.exp %45 : vector<17x17xf32>
    %cst_19 = arith.constant dense<0.000000e+00> : vector<17xf32>
    %47 = vector.multi_reduction <add>, %46, %cst_19 [1] : vector<17x17xf32> to vector<17xf32>
    %48 = vector.shape_cast %47 : vector<17xf32> to vector<17x1xf32>
    %49 = tpu.reciprocal %48 {approx = true} : vector<17x1xf32> -> vector<17x1xf32>
    %50 = vector.broadcast %49 : vector<17x1xf32> to vector<17x17xf32>
    %51 = arith.mulf %46, %50 : vector<17x17xf32>
    %52 = arith.truncf %51 : vector<17x17xf32> to vector<17x17xbf16>
    %cst_20 = arith.constant dense<0.000000e+00> : vector<17x8xf32>
    %53 = tpu.matmul %52, %40, %cst_20 {dimension_numbers = #tpu.dot_dimension_numbers<[1], [0], [0], [1], [0, 0, 1, 1], [], []>} : vector<17x17xbf16>, vector<17x8xbf16>, vector<17x8xf32> -> vector<17x8xf32>
    %54 = vector.extract_strided_slice %34 {offsets = [0, 8], sizes = [17, 8], strides = [1, 1]} : vector<17x96xf32> to vector<17x8xf32>
    %55 = arith.truncf %54 : vector<17x8xf32> to vector<17x8xbf16>
    %56 = vector.extract_strided_slice %34 {offsets = [0, 40], sizes = [17, 8], strides = [1, 1]} : vector<17x96xf32> to vector<17x8xf32>
    %57 = arith.truncf %56 : vector<17x8xf32> to vector<17x8xbf16>
    %58 = vector.extract_strided_slice %34 {offsets = [0, 72], sizes = [17, 8], strides = [1, 1]} : vector<17x96xf32> to vector<17x8xf32>
    %59 = arith.truncf %58 : vector<17x8xf32> to vector<17x8xbf16>
    %cst_21 = arith.constant dense<0.000000e+00> : vector<17x17xf32>
    %60 = tpu.matmul %55, %57, %cst_21 {dimension_numbers = #tpu.dot_dimension_numbers<[1], [1], [0], [0], [0, 0, 1, 0], [], []>} : vector<17x8xbf16>, vector<17x8xbf16>, vector<17x17xf32> -> vector<17x17xf32>
    %cst_22 = arith.constant dense<0xFF800000> : vector<17xf32>
    %61 = vector.multi_reduction <maximumf>, %60, %cst_22 [1] : vector<17x17xf32> to vector<17xf32>
    %62 = vector.shape_cast %61 : vector<17xf32> to vector<17x1xf32>
    %63 = vector.broadcast %62 : vector<17x1xf32> to vector<17x17xf32>
    %64 = arith.subf %60, %63 : vector<17x17xf32>
    %65 = math.exp %64 : vector<17x17xf32>
    %cst_23 = arith.constant dense<0.000000e+00> : vector<17xf32>
    %66 = vector.multi_reduction <add>, %65, %cst_23 [1] : vector<17x17xf32> to vector<17xf32>
    %67 = vector.shape_cast %66 : vector<17xf32> to vector<17x1xf32>
    %68 = tpu.reciprocal %67 {approx = true} : vector<17x1xf32> -> vector<17x1xf32>
    %69 = vector.broadcast %68 : vector<17x1xf32> to vector<17x17xf32>
    %70 = arith.mulf %65, %69 : vector<17x17xf32>
    %71 = arith.truncf %70 : vector<17x17xf32> to vector<17x17xbf16>
    %cst_24 = arith.constant dense<0.000000e+00> : vector<17x8xf32>
    %72 = tpu.matmul %71, %59, %cst_24 {dimension_numbers = #tpu.dot_dimension_numbers<[1], [0], [0], [1], [0, 0, 1, 1], [], []>} : vector<17x17xbf16>, vector<17x8xbf16>, vector<17x8xf32> -> vector<17x8xf32>
    %73 = vector.extract_strided_slice %34 {offsets = [0, 16], sizes = [17, 8], strides = [1, 1]} : vector<17x96xf32> to vector<17x8xf32>
    %74 = arith.truncf %73 : vector<17x8xf32> to vector<17x8xbf16>
    %75 = vector.extract_strided_slice %34 {offsets = [0, 48], sizes = [17, 8], strides = [1, 1]} : vector<17x96xf32> to vector<17x8xf32>
    %76 = arith.truncf %75 : vector<17x8xf32> to vector<17x8xbf16>
    %77 = vector.extract_strided_slice %34 {offsets = [0, 80], sizes = [17, 8], strides = [1, 1]} : vector<17x96xf32> to vector<17x8xf32>
    %78 = arith.truncf %77 : vector<17x8xf32> to vector<17x8xbf16>
    %cst_25 = arith.constant dense<0.000000e+00> : vector<17x17xf32>
    %79 = tpu.matmul %74, %76, %cst_25 {dimension_numbers = #tpu.dot_dimension_numbers<[1], [1], [0], [0], [0, 0, 1, 0], [], []>} : vector<17x8xbf16>, vector<17x8xbf16>, vector<17x17xf32> -> vector<17x17xf32>
    %cst_26 = arith.constant dense<0xFF800000> : vector<17xf32>
    %80 = vector.multi_reduction <maximumf>, %79, %cst_26 [1] : vector<17x17xf32> to vector<17xf32>
    %81 = vector.shape_cast %80 : vector<17xf32> to vector<17x1xf32>
    %82 = vector.broadcast %81 : vector<17x1xf32> to vector<17x17xf32>
    %83 = arith.subf %79, %82 : vector<17x17xf32>
    %84 = math.exp %83 : vector<17x17xf32>
    %cst_27 = arith.constant dense<0.000000e+00> : vector<17xf32>
    %85 = vector.multi_reduction <add>, %84, %cst_27 [1] : vector<17x17xf32> to vector<17xf32>
    %86 = vector.shape_cast %85 : vector<17xf32> to vector<17x1xf32>
    %87 = tpu.reciprocal %86 {approx = true} : vector<17x1xf32> -> vector<17x1xf32>
    %88 = vector.broadcast %87 : vector<17x1xf32> to vector<17x17xf32>
    %89 = arith.mulf %84, %88 : vector<17x17xf32>
    %90 = arith.truncf %89 : vector<17x17xf32> to vector<17x17xbf16>
    %cst_28 = arith.constant dense<0.000000e+00> : vector<17x8xf32>
    %91 = tpu.matmul %90, %78, %cst_28 {dimension_numbers = #tpu.dot_dimension_numbers<[1], [0], [0], [1], [0, 0, 1, 1], [], []>} : vector<17x17xbf16>, vector<17x8xbf16>, vector<17x8xf32> -> vector<17x8xf32>
    %92 = vector.extract_strided_slice %34 {offsets = [0, 24], sizes = [17, 8], strides = [1, 1]} : vector<17x96xf32> to vector<17x8xf32>
    %93 = arith.truncf %92 : vector<17x8xf32> to vector<17x8xbf16>
    %94 = vector.extract_strided_slice %34 {offsets = [0, 56], sizes = [17, 8], strides = [1, 1]} : vector<17x96xf32> to vector<17x8xf32>
    %95 = arith.truncf %94 : vector<17x8xf32> to vector<17x8xbf16>
    %96 = vector.extract_strided_slice %34 {offsets = [0, 88], sizes = [17, 8], strides = [1, 1]} : vector<17x96xf32> to vector<17x8xf32>
    %97 = arith.truncf %96 : vector<17x8xf32> to vector<17x8xbf16>
    %cst_29 = arith.constant dense<0.000000e+00> : vector<17x17xf32>
    %98 = tpu.matmul %93, %95, %cst_29 {dimension_numbers = #tpu.dot_dimension_numbers<[1], [1], [0], [0], [0, 0, 1, 0], [], []>} : vector<17x8xbf16>, vector<17x8xbf16>, vector<17x17xf32> -> vector<17x17xf32>
    %cst_30 = arith.constant dense<0xFF800000> : vector<17xf32>
    %99 = vector.multi_reduction <maximumf>, %98, %cst_30 [1] : vector<17x17xf32> to vector<17xf32>
    %100 = vector.shape_cast %99 : vector<17xf32> to vector<17x1xf32>
    %101 = vector.broadcast %100 : vector<17x1xf32> to vector<17x17xf32>
    %102 = arith.subf %98, %101 : vector<17x17xf32>
    %103 = math.exp %102 : vector<17x17xf32>
    %cst_31 = arith.constant dense<0.000000e+00> : vector<17xf32>
    %104 = vector.multi_reduction <add>, %103, %cst_31 [1] : vector<17x17xf32> to vector<17xf32>
    %105 = vector.shape_cast %104 : vector<17xf32> to vector<17x1xf32>
    %106 = tpu.reciprocal %105 {approx = true} : vector<17x1xf32> -> vector<17x1xf32>
    %107 = vector.broadcast %106 : vector<17x1xf32> to vector<17x17xf32>
    %108 = arith.mulf %103, %107 : vector<17x17xf32>
    %109 = arith.truncf %108 : vector<17x17xf32> to vector<17x17xbf16>
    %cst_32 = arith.constant dense<0.000000e+00> : vector<17x8xf32>
    %110 = tpu.matmul %109, %97, %cst_32 {dimension_numbers = #tpu.dot_dimension_numbers<[1], [0], [0], [1], [0, 0, 1, 1], [], []>} : vector<17x17xbf16>, vector<17x8xbf16>, vector<17x8xf32> -> vector<17x8xf32>
    %111 = tpu.concatenate %53, %72, %91, %110 in 1 : vector<17x8xf32>, vector<17x8xf32>, vector<17x8xf32>, vector<17x8xf32> -> vector<17x32xf32>
    %112 = arith.truncf %111 : vector<17x32xf32> to vector<17x32xbf16>
    %c0_33 = arith.constant 0 : index
    %c0_34 = arith.constant 0 : index
    %c0_35 = arith.constant 0 : index
    %113 = vector.load %arg6[%c0_33, %c0_34, %c0_35] : memref<1x32x32xbf16, #tpu.memory_space<vmem>>, vector<1x32x32xbf16>
    %114 = vector.shape_cast %113 : vector<1x32x32xbf16> to vector<32x32xbf16>
    %cst_36 = arith.constant dense<0.000000e+00> : vector<17x32xf32>
    %115 = tpu.matmul %112, %114, %cst_36 {dimension_numbers = #tpu.dot_dimension_numbers<[1], [0], [0], [1], [0, 0, 1, 1], [], []>} : vector<17x32xbf16>, vector<32x32xbf16>, vector<17x32xf32> -> vector<17x32xf32>
    %116 = arith.addf %4, %115 : vector<17x32xf32>
    %c0_37 = arith.constant 0 : index
    %c0_38 = arith.constant 0 : index
    %c0_39 = arith.constant 0 : index
    %117 = vector.load %arg7[%c0_37, %c0_38, %c0_39] : memref<1x1x32xf32, #tpu.memory_space<vmem>>, vector<1x1x32xf32>
    %118 = vector.shape_cast %117 : vector<1x1x32xf32> to vector<1x32xf32>
    %119 = vector.broadcast %118 : vector<1x32xf32> to vector<17x32xf32>
    %120 = arith.addf %116, %119 : vector<17x32xf32>
    %c0_40 = arith.constant 0 : index
    %c0_41 = arith.constant 0 : index
    %c0_42 = arith.constant 0 : index
    %121 = vector.load %arg8[%c0_40, %c0_41, %c0_42] : memref<1x1x32xf32, #tpu.memory_space<vmem>>, vector<1x1x32xf32>
    %122 = vector.shape_cast %121 : vector<1x1x32xf32> to vector<1x32xf32>
    %c0_43 = arith.constant 0 : index
    %c0_44 = arith.constant 0 : index
    %c0_45 = arith.constant 0 : index
    %123 = vector.load %arg9[%c0_43, %c0_44, %c0_45] : memref<1x1x32xf32, #tpu.memory_space<vmem>>, vector<1x1x32xf32>
    %124 = vector.shape_cast %123 : vector<1x1x32xf32> to vector<1x32xf32>
    %cst_46 = arith.constant dense<0.000000e+00> : vector<17xf32>
    %125 = vector.multi_reduction <add>, %120, %cst_46 [1] : vector<17x32xf32> to vector<17xf32>
    %126 = vector.shape_cast %125 : vector<17xf32> to vector<17x1xf32>
    %cst_47 = arith.constant 3.200000e+01 : f32
    %127 = vector.broadcast %cst_47 : f32 to vector<17x1xf32>
    %128 = arith.divf %126, %127 : vector<17x1xf32>
    %129 = vector.broadcast %128 : vector<17x1xf32> to vector<17x32xf32>
    %130 = arith.subf %120, %129 : vector<17x32xf32>
    %131 = arith.mulf %130, %130 : vector<17x32xf32>
    %cst_48 = arith.constant dense<0.000000e+00> : vector<17xf32>
    %132 = vector.multi_reduction <add>, %131, %cst_48 [1] : vector<17x32xf32> to vector<17xf32>
    %133 = vector.shape_cast %132 : vector<17xf32> to vector<17x1xf32>
    %cst_49 = arith.constant 3.200000e+01 : f32
    %134 = vector.broadcast %cst_49 : f32 to vector<17x1xf32>
    %135 = arith.divf %133, %134 : vector<17x1xf32>
    %136 = vector.broadcast %128 : vector<17x1xf32> to vector<17x32xf32>
    %137 = arith.subf %120, %136 : vector<17x32xf32>
    %cst_50 = arith.constant 9.99999974E-6 : f32
    %138 = vector.broadcast %cst_50 : f32 to vector<17x1xf32>
    %139 = arith.addf %135, %138 : vector<17x1xf32>
    %140 = math.rsqrt %139 : vector<17x1xf32>
    %141 = vector.broadcast %140 : vector<17x1xf32> to vector<17x32xf32>
    %142 = arith.mulf %137, %141 : vector<17x32xf32>
    %143 = vector.broadcast %122 : vector<1x32xf32> to vector<17x32xf32>
    %144 = arith.mulf %142, %143 : vector<17x32xf32>
    %145 = vector.broadcast %124 : vector<1x32xf32> to vector<17x32xf32>
    %146 = arith.addf %144, %145 : vector<17x32xf32>
    %147 = arith.truncf %146 : vector<17x32xf32> to vector<17x32xbf16>
    %c0_51 = arith.constant 0 : index
    %c0_52 = arith.constant 0 : index
    %c0_53 = arith.constant 0 : index
    %148 = vector.load %arg10[%c0_51, %c0_52, %c0_53] : memref<1x32x64xbf16, #tpu.memory_space<vmem>>, vector<1x32x64xbf16>
    %149 = vector.shape_cast %148 : vector<1x32x64xbf16> to vector<32x64xbf16>
    %cst_54 = arith.constant dense<0.000000e+00> : vector<17x64xf32>
    %150 = tpu.matmul %147, %149, %cst_54 {dimension_numbers = #tpu.dot_dimension_numbers<[1], [0], [0], [1], [0, 0, 1, 1], [], []>} : vector<17x32xbf16>, vector<32x64xbf16>, vector<17x64xf32> -> vector<17x64xf32>
    %c0_55 = arith.constant 0 : index
    %c0_56 = arith.constant 0 : index
    %c0_57 = arith.constant 0 : index
    %151 = vector.load %arg11[%c0_55, %c0_56, %c0_57] : memref<1x1x64xf32, #tpu.memory_space<vmem>>, vector<1x1x64xf32>
    %152 = vector.shape_cast %151 : vector<1x1x64xf32> to vector<1x64xf32>
    %153 = vector.broadcast %152 : vector<1x64xf32> to vector<17x64xf32>
    %154 = arith.addf %150, %153 : vector<17x64xf32>
    %cst_58 = arith.constant 5.000000e-01 : f32
    %155 = vector.broadcast %cst_58 : f32 to vector<17x64xf32>
    %156 = arith.mulf %155, %154 : vector<17x64xf32>
    %cst_59 = arith.constant 4.471500e-02 : f32
    %157 = vector.broadcast %cst_59 : f32 to vector<17x64xf32>
    %158 = arith.mulf %157, %154 : vector<17x64xf32>
    %159 = arith.mulf %158, %154 : vector<17x64xf32>
    %160 = arith.mulf %159, %154 : vector<17x64xf32>
    %161 = arith.addf %154, %160 : vector<17x64xf32>
    %cst_60 = arith.constant 0.797884583 : f32
    %162 = vector.broadcast %cst_60 : f32 to vector<17x64xf32>
    %163 = arith.mulf %162, %161 : vector<17x64xf32>
    %164 = math.tanh %163 : vector<17x64xf32>
    %cst_61 = arith.constant 1.000000e+00 : f32
    %165 = vector.broadcast %cst_61 : f32 to vector<17x64xf32>
    %166 = arith.addf %165, %164 : vector<17x64xf32>
    %167 = arith.mulf %156, %166 : vector<17x64xf32>
    %168 = arith.truncf %167 : vector<17x64xf32> to vector<17x64xbf16>
    %c0_62 = arith.constant 0 : index
    %c0_63 = arith.constant 0 : index
    %c0_64 = arith.constant 0 : index
    %169 = vector.load %arg12[%c0_62, %c0_63, %c0_64] : memref<1x64x32xbf16, #tpu.memory_space<vmem>>, vector<1x64x32xbf16>
    %170 = vector.shape_cast %169 : vector<1x64x32xbf16> to vector<64x32xbf16>
    %cst_65 = arith.constant dense<0.000000e+00> : vector<17x32xf32>
    %171 = tpu.matmul %168, %170, %cst_65 {dimension_numbers = #tpu.dot_dimension_numbers<[1], [0], [0], [1], [0, 0, 1, 1], [], []>} : vector<17x64xbf16>, vector<64x32xbf16>, vector<17x32xf32> -> vector<17x32xf32>
    %172 = arith.addf %120, %171 : vector<17x32xf32>
    %c0_66 = arith.constant 0 : index
    %c0_67 = arith.constant 0 : index
    %c0_68 = arith.constant 0 : index
    %173 = vector.load %arg13[%c0_66, %c0_67, %c0_68] : memref<1x1x32xf32, #tpu.memory_space<vmem>>, vector<1x1x32xf32>
    %174 = vector.shape_cast %173 : vector<1x1x32xf32> to vector<1x32xf32>
    %175 = vector.broadcast %174 : vector<1x32xf32> to vector<17x32xf32>
    %176 = arith.addf %172, %175 : vector<17x32xf32>
    %c0_69 = arith.constant 0 : index
    %c0_70 = arith.constant 0 : index
    %c0_71 = arith.constant 0 : index
    %177 = vector.load %arg19[%c0_69, %c0_70, %c0_71] : memref<1x17x32xf32, #tpu.memory_space<vmem>>, vector<1x17x32xf32>
    %178 = vector.shape_cast %177 : vector<1x17x32xf32> to vector<17x32xf32>
    %179 = vector.shape_cast %176 : vector<17x32xf32> to vector<1x17x32xf32>
    tpu.vector_store %arg19[%c0_69, %c0_70, %c0_71], %179 {strides = array<i32>} : memref<1x17x32xf32, #tpu.memory_space<vmem>>, vector<1x17x32xf32>,
    %c1_i32 = arith.constant 1 : i32
    %180 = arith.cmpi eq, %arg1, %c1_i32 : i32
    %181 = arith.extui %180 : i1 to i32
    %c0_i32_72 = arith.constant 0 : i32
    %182 = arith.cmpi ne, %181, %c0_i32_72 : i32
    scf.if %182 {
      %c0_73 = arith.constant 0 : index
      %c0_74 = arith.constant 0 : index
      %c0_75 = arith.constant 0 : index
      %183 = vector.load %arg19[%c0_73, %c0_74, %c0_75] : memref<1x17x32xf32, #tpu.memory_space<vmem>>, vector<1x17x32xf32>
      %184 = vector.extract_strided_slice %183 {offsets = [0, 0, 0], sizes = [1, 1, 32], strides = [1, 1, 1]} : vector<1x17x32xf32> to vector<1x1x32xf32>
      %185 = vector.shape_cast %184 : vector<1x1x32xf32> to vector<1x32xf32>
      %c0_76 = arith.constant 0 : index
      %c0_77 = arith.constant 0 : index
      %186 = vector.load %arg14[%c0_76, %c0_77] : memref<1x32xf32, #tpu.memory_space<vmem>>, vector<1x32xf32>
      %c0_78 = arith.constant 0 : index
      %c0_79 = arith.constant 0 : index
      %187 = vector.load %arg15[%c0_78, %c0_79] : memref<1x32xf32, #tpu.memory_space<vmem>>, vector<1x32xf32>
      %cst_80 = arith.constant dense<0.000000e+00> : vector<1xf32>
      %188 = vector.multi_reduction <add>, %185, %cst_80 [1] : vector<1x32xf32> to vector<1xf32>
      %189 = vector.shape_cast %188 : vector<1xf32> to vector<1x1xf32>
      %cst_81 = arith.constant 3.200000e+01 : f32
      %190 = vector.broadcast %cst_81 : f32 to vector<1x1xf32>
      %191 = arith.divf %189, %190 : vector<1x1xf32>
      %192 = vector.broadcast %191 : vector<1x1xf32> to vector<1x32xf32>
      %193 = arith.subf %185, %192 : vector<1x32xf32>
      %194 = arith.mulf %193, %193 : vector<1x32xf32>
      %cst_82 = arith.constant dense<0.000000e+00> : vector<1xf32>
      %195 = vector.multi_reduction <add>, %194, %cst_82 [1] : vector<1x32xf32> to vector<1xf32>
      %196 = vector.shape_cast %195 : vector<1xf32> to vector<1x1xf32>
      %cst_83 = arith.constant 3.200000e+01 : f32
      %197 = vector.broadcast %cst_83 : f32 to vector<1x1xf32>
      %198 = arith.divf %196, %197 : vector<1x1xf32>
      %199 = vector.broadcast %191 : vector<1x1xf32> to vector<1x32xf32>
      %200 = arith.subf %185, %199 : vector<1x32xf32>
      %cst_84 = arith.constant 9.99999974E-6 : f32
      %201 = vector.broadcast %cst_84 : f32 to vector<1x1xf32>
      %202 = arith.addf %198, %201 : vector<1x1xf32>
      %203 = math.rsqrt %202 : vector<1x1xf32>
      %204 = vector.broadcast %203 : vector<1x1xf32> to vector<1x32xf32>
      %205 = arith.mulf %200, %204 : vector<1x32xf32>
      %206 = arith.mulf %205, %186 : vector<1x32xf32>
      %207 = arith.addf %206, %187 : vector<1x32xf32>
      %208 = arith.truncf %207 : vector<1x32xf32> to vector<1x32xbf16>
      %c0_85 = arith.constant 0 : index
      %c0_86 = arith.constant 0 : index
      %209 = vector.load %arg16[%c0_85, %c0_86] : memref<32x128xbf16, #tpu.memory_space<vmem>>, vector<32x128xbf16>
      %cst_87 = arith.constant dense<0.000000e+00> : vector<1x128xf32>
      %210 = tpu.matmul %208, %209, %cst_87 {dimension_numbers = #tpu.dot_dimension_numbers<[1], [0], [0], [1], [0, 0, 1, 1], [], []>} : vector<1x32xbf16>, vector<32x128xbf16>, vector<1x128xf32> -> vector<1x128xf32>
      %c0_88 = arith.constant 0 : index
      %c0_89 = arith.constant 0 : index
      %211 = vector.load %arg17[%c0_88, %c0_89] : memref<1x128xf32, #tpu.memory_space<vmem>>, vector<1x128xf32>
      %212 = arith.addf %210, %211 : vector<1x128xf32>
      %c0_90 = arith.constant 0 : index
      %c0_91 = arith.constant 0 : index
      %c0_92 = arith.constant 0 : index
      %213 = vector.load %arg18[%c0_90, %c0_91, %c0_92] : memref<1x1x128xf32, #tpu.memory_space<vmem>>, vector<1x1x128xf32>
      %214 = vector.shape_cast %213 : vector<1x1x128xf32> to vector<1x128xf32>
      %215 = vector.shape_cast %212 : vector<1x128xf32> to vector<1x1x128xf32>
      tpu.vector_store %arg18[%c0_90, %c0_91, %c0_92], %215 {strides = array<i32>} : memref<1x1x128xf32, #tpu.memory_space<vmem>>, vector<1x1x128xf32>,
    } else {
    }
    return
  }
  func.func @transform_0(%arg0: i32, %arg1: i32) -> (i32, i32, i32) {
    %c0_i32 = arith.constant 0 : i32
    %c0_i32_0 = arith.constant 0 : i32
    %c0_i32_1 = arith.constant 0 : i32
    return %arg0, %c0_i32, %c0_i32_0 : i32, i32, i32
  }
  func.func @transform_1(%arg0: i32, %arg1: i32) -> (i32, i32, i32) {
    %c0_i32 = arith.constant 0 : i32
    %c0_i32_0 = arith.constant 0 : i32
    %c0_i32_1 = arith.constant 0 : i32
    return %arg1, %c0_i32, %c0_i32_0 : i32, i32, i32
  }
  func.func @transform_2(%arg0: i32, %arg1: i32) -> (i32, i32, i32) {
    %c0_i32 = arith.constant 0 : i32
    %c0_i32_0 = arith.constant 0 : i32
    %c0_i32_1 = arith.constant 0 : i32
    return %arg1, %c0_i32, %c0_i32_0 : i32, i32, i32
  }
  func.func @transform_3(%arg0: i32, %arg1: i32) -> (i32, i32, i32) {
    %c0_i32 = arith.constant 0 : i32
    %c0_i32_0 = arith.constant 0 : i32
    %c0_i32_1 = arith.constant 0 : i32
    return %arg1, %c0_i32, %c0_i32_0 : i32, i32, i32
  }
  func.func @transform_4(%arg0: i32, %arg1: i32) -> (i32, i32, i32) {
    %c0_i32 = arith.constant 0 : i32
    %c0_i32_0 = arith.constant 0 : i32
    %c0_i32_1 = arith.constant 0 : i32
    return %arg1, %c0_i32, %c0_i32_0 : i32, i32, i32
  }
  func.func @transform_5(%arg0: i32, %arg1: i32) -> (i32, i32, i32) {
    %c0_i32 = arith.constant 0 : i32
    %c0_i32_0 = arith.constant 0 : i32
    %c0_i32_1 = arith.constant 0 : i32
    return %arg1, %c0_i32, %c0_i32_0 : i32, i32, i32
  }
  func.func @transform_6(%arg0: i32, %arg1: i32) -> (i32, i32, i32) {
    %c0_i32 = arith.constant 0 : i32
    %c0_i32_0 = arith.constant 0 : i32
    %c0_i32_1 = arith.constant 0 : i32
    return %arg1, %c0_i32, %c0_i32_0 : i32, i32, i32
  }
  func.func @transform_7(%arg0: i32, %arg1: i32) -> (i32, i32, i32) {
    %c0_i32 = arith.constant 0 : i32
    %c0_i32_0 = arith.constant 0 : i32
    %c0_i32_1 = arith.constant 0 : i32
    return %arg1, %c0_i32, %c0_i32_0 : i32, i32, i32
  }
  func.func @transform_8(%arg0: i32, %arg1: i32) -> (i32, i32, i32) {
    %c0_i32 = arith.constant 0 : i32
    %c0_i32_0 = arith.constant 0 : i32
    %c0_i32_1 = arith.constant 0 : i32
    return %arg1, %c0_i32, %c0_i32_0 : i32, i32, i32
  }
  func.func @transform_9(%arg0: i32, %arg1: i32) -> (i32, i32, i32) {
    %c0_i32 = arith.constant 0 : i32
    %c0_i32_0 = arith.constant 0 : i32
    %c0_i32_1 = arith.constant 0 : i32
    return %arg1, %c0_i32, %c0_i32_0 : i32, i32, i32
  }
  func.func @transform_10(%arg0: i32, %arg1: i32) -> (i32, i32, i32) {
    %c0_i32 = arith.constant 0 : i32
    %c0_i32_0 = arith.constant 0 : i32
    %c0_i32_1 = arith.constant 0 : i32
    return %arg1, %c0_i32, %c0_i32_0 : i32, i32, i32
  }
  func.func @transform_11(%arg0: i32, %arg1: i32) -> (i32, i32, i32) {
    %c0_i32 = arith.constant 0 : i32
    %c0_i32_0 = arith.constant 0 : i32
    %c0_i32_1 = arith.constant 0 : i32
    return %arg1, %c0_i32, %c0_i32_0 : i32, i32, i32
  }
  func.func @transform_12(%arg0: i32, %arg1: i32) -> (i32, i32) {
    %c0_i32 = arith.constant 0 : i32
    %c0_i32_0 = arith.constant 0 : i32
    %c0_i32_1 = arith.constant 0 : i32
    return %c0_i32, %c0_i32_0 : i32, i32
  }
  func.func @transform_13(%arg0: i32, %arg1: i32) -> (i32, i32) {
    %c0_i32 = arith.constant 0 : i32
    %c0_i32_0 = arith.constant 0 : i32
    %c0_i32_1 = arith.constant 0 : i32
    return %c0_i32, %c0_i32_0 : i32, i32
  }
  func.func @transform_14(%arg0: i32, %arg1: i32) -> (i32, i32) {
    %c0_i32 = arith.constant 0 : i32
    %c0_i32_0 = arith.constant 0 : i32
    %c0_i32_1 = arith.constant 0 : i32
    return %c0_i32, %c0_i32_0 : i32, i32
  }
  func.func @transform_15(%arg0: i32, %arg1: i32) -> (i32, i32) {
    %c0_i32 = arith.constant 0 : i32
    %c0_i32_0 = arith.constant 0 : i32
    %c0_i32_1 = arith.constant 0 : i32
    return %c0_i32, %c0_i32_0 : i32, i32
  }
  func.func @transform_16(%arg0: i32, %arg1: i32) -> (i32, i32, i32) {
    %c0_i32 = arith.constant 0 : i32
    %c0_i32_0 = arith.constant 0 : i32
    %c0_i32_1 = arith.constant 0 : i32
    return %arg0, %c0_i32, %c0_i32_0 : i32, i32, i32
  }
}

</mosaic_0001>

<llo_original>
// kernel: tpu_custom_call.1
$region0: #{tpu_custom_call.1}
  #allocation0 [shape = 'u32[]', space=smem, size = 0x4, offset = 0x4, fixed_abs, tag = 'smem constant byte address 0x4 - core index']
  #allocation1 [shape = 'u32[144,128]{1,0:T(1,128)}', space=vmem, size = 0x12000, scoped, tag = 'internal scratch']
  #allocation2 [shape = 'f32[1,17,32]{2,1,0:T(8,128)}', space=vmem, size = 0x3000, scoped, tag = 'scratch operand']
  %s0 = inlined_call_operand.vmem [shape: f32[2,17,32], index: 0, kind: input, shape index: {}]
  %s1 = inlined_call_operand.vmem [shape: f32[2,1,32], index: 1, kind: input, shape index: {}]
  %s2 = inlined_call_operand.vmem [shape: f32[2,1,32], index: 2, kind: input, shape index: {}]
  %s3 = inlined_call_operand.vmem [shape: bf16[2,32,96], index: 3, kind: input, shape index: {}]
  %s4 = inlined_call_operand.vmem [shape: bf16[2,32,32], index: 4, kind: input, shape index: {}]
  %s5 = inlined_call_operand.vmem [shape: f32[2,1,32], index: 5, kind: input, shape index: {}]
  %s6 = inlined_call_operand.vmem [shape: f32[2,1,32], index: 6, kind: input, shape index: {}]
  %s7 = inlined_call_operand.vmem [shape: f32[2,1,32], index: 7, kind: input, shape index: {}]
  %s8 = inlined_call_operand.vmem [shape: bf16[2,32,64], index: 8, kind: input, shape index: {}]
  %s9 = inlined_call_operand.vmem [shape: f32[2,1,64], index: 9, kind: input, shape index: {}]
  %s10 = inlined_call_operand.vmem [shape: bf16[2,64,32], index: 10, kind: input, shape index: {}]
  %s11 = inlined_call_operand.vmem [shape: f32[2,1,32], index: 11, kind: input, shape index: {}]
  %s12 = inlined_call_operand.vmem [shape: f32[1,32], index: 12, kind: input, shape index: {}]
  %s13 = inlined_call_operand.vmem [shape: f32[1,32], index: 13, kind: input, shape index: {}]
  %s14 = inlined_call_operand.vmem [shape: bf16[32,128], index: 14, kind: input, shape index: {}]
  %s15 = inlined_call_operand.vmem [shape: f32[1,128], index: 15, kind: input, shape index: {}]
  %s16 = inlined_call_operand.hbm [shape: f32[2,1,128], index: 16, kind: output, shape index: {}]
  %s17 = sld [smem:[#allocation0]]
  $region105: #{tpu_custom_call.1} parent=0
    _
  %s19 = ssub.s32 1, %s17
  %s20 = scalar_select 0, %s19, %s17
  $region1: #{tpu_custom_call.1} parent=0
    #allocation3 [shape = 'u8[1024]{0}', space=vmem, size = 0x400, scoped, tag = 'output window, operand 0']
    #allocation4 [shape = 's32[2]{0}', space=sflag, size = 0x8, scoped, tag = 'scoped memory for tpu_custom_call.1']
    %21 = vsyncpa [#allocation4], 0
    %s22 = scalar_lea.sflag [#allocation4], 1
    %23 = vsyncpa %s22, 0
    loop: start=0, step=1, limit=6
    $region2: #{tpu_custom_call.1} parent=1 // loop_pre_header
      _
    $region3: #{tpu_custom_call.1} parent=1 // loop_header
      %s25 = sphi 0, %s29
      %p26 = scmp.ge.s32.totalorder %s25, 6
      %s32 = sphi 0, %s44
      %s33 = sphi 0, %s40
      %s34 = sphi 0, %s32
      %s35 = sphi 0, %s33
      %s36 = sphi 0, %s34
      %s37 = sphi 0, %s35
      %s47 = sphi 0, %s49
      %s50 = sphi 0, %s47
      %s51 = sphi 0, %s50
      %s67 = sphi 0, %s51
      %s73 = sphi 0, %s75
      %s76 = sphi 0, %s73
      %s77 = sphi 0, %s76
      %s93 = sphi 0, %s77
      %s99 = sphi 0, %s101
      %s102 = sphi 0, %s99
      %s103 = sphi 0, %s102
      %s119 = sphi 0, %s103
      %s125 = sphi 0, %s127
      %s128 = sphi 0, %s125
      %s129 = sphi 0, %s128
      %s145 = sphi 0, %s129
      %s151 = sphi 0, %s153
      %s154 = sphi 0, %s151
      %s155 = sphi 0, %s154
      %s171 = sphi 0, %s155
      %s177 = sphi 0, %s179
      %s180 = sphi 0, %s177
      %s181 = sphi 0, %s180
      %s197 = sphi 0, %s181
      %s203 = sphi 0, %s205
      %s206 = sphi 0, %s203
      %s207 = sphi 0, %s206
      %s223 = sphi 0, %s207
      %s229 = sphi 0, %s231
      %s232 = sphi 0, %s229
      %s233 = sphi 0, %s232
      %s249 = sphi 0, %s233
      %s255 = sphi 0, %s257
      %s258 = sphi 0, %s255
      %s259 = sphi 0, %s258
      %s275 = sphi 0, %s259
      %s281 = sphi 0, %s283
      %s284 = sphi 0, %s281
      %s285 = sphi 0, %s284
      %s301 = sphi 0, %s285
      %s307 = sphi 0, %s309
      %s310 = sphi 0, %s307
      %s311 = sphi 0, %s310
      %s327 = sphi 0, %s311
      %s333 = sphi 0, %s335
      %s336 = sphi 0, %s333
      %s337 = sphi 0, %s336
      %s353 = sphi 0, %s337
      %s357 = sphi 0, %s357
      %s359 = sphi 0, %s357
      %s360 = sphi 0, %s359
      %s374 = sphi 0, %s360
      %s378 = sphi 0, %s378
      %s380 = sphi 0, %s378
      %s381 = sphi 0, %s380
      %s395 = sphi 0, %s381
      %s399 = sphi 0, %s399
      %s401 = sphi 0, %s399
      %s402 = sphi 0, %s401
      %s416 = sphi 0, %s402
      %s420 = sphi 0, %s420
      %s422 = sphi 0, %s420
      %s423 = sphi 0, %s422
      %s437 = sphi 0, %s423
      %s443 = sphi 0, %s445
      %s446 = sphi 0, %s443
      %s447 = sphi 0, %s446
      %s463 = sphi 0, %s447
    $region4: #{tpu_custom_call.1} parent=1 // loop_header_branch
      %28 = sbr.rel (%p26) target = $region8
    $region5: #{tpu_custom_call.1} parent=1 // loop_body
      %s30 = ssub.s32 %s25, 1
      %s31 = ssub.s32 %s25, 2
      %s38 = sadd.s32 1, %s33
      %p39 = scmp.ge.s32.totalorder %s38, 2
      %s40 = scalar_select %p39, 0, %s38
      %s41 = sadd.s32 1, %s32
      %s42 = scalar_select %p39, %s41, %s32
      %p43 = scmp.ge.s32.totalorder %s42, 2
      %s44 = scalar_select %p43, 0, %s42
      %s45 = ssub.s32 %s32, %s44
      %p46 = scmp.eq.s32.totalorder %s45, 0
      %s48 = sadd.s32 %s47, 1
      %s49 = scalar_select %p46, %s47, %s48
      %p52 = pneg %p46
      %p53 = scmp.eq.s32.totalorder %s25, 3
      %p54 = por %p52, %p53
      %p55 = scmp.ne.s32.totalorder %s47, %s50
      %p56 = scmp.eq.s32.totalorder %s25, 0
      %p57 = por %p55, %p56
      %p58 = scmp.ne.s32.totalorder %s47, %s50
      %p59 = scmp.eq.s32.totalorder %s30, 3
      %p60 = por %p58, %p59
      %p61 = scmp.ne.s32.totalorder %s50, %s51
      %p62 = scmp.eq.s32.totalorder %s30, 0
      %p63 = por %p61, %p62
      %p64 = scmp.ne.s32.totalorder %s50, %s51
      %p65 = scmp.eq.s32.totalorder %s31, 3
      %p66 = por %p64, %p65
      %p68 = scmp.ne.s32.totalorder %s51, %s67
      %p69 = scmp.eq.s32.totalorder %s31, 0
      %p70 = por %p68, %p69
      %s71 = ssub.s32 %s33, %s40
      %p72 = scmp.eq.s32.totalorder %s71, 0
      %s74 = sadd.s32 %s73, 1
      %s75 = scalar_select %p72, %s73, %s74
      %p78 = pneg %p72
      %p79 = scmp.eq.s32.totalorder %s25, 3
      %p80 = por %p78, %p79
      %p81 = scmp.ne.s32.totalorder %s73, %s76
      %p82 = scmp.eq.s32.totalorder %s25, 0
      %p83 = por %p81, %p82
      %p84 = scmp.ne.s32.totalorder %s73, %s76
      %p85 = scmp.eq.s32.totalorder %s30, 3
      %p86 = por %p84, %p85
      %p87 = scmp.ne.s32.totalorder %s76, %s77
      %p88 = scmp.eq.s32.totalorder %s30, 0
      %p89 = por %p87, %p88
      %p90 = scmp.ne.s32.totalorder %s76, %s77
      %p91 = scmp.eq.s32.totalorder %s31, 3
      %p92 = por %p90, %p91
      %p94 = scmp.ne.s32.totalorder %s77, %s93
      %p95 = scmp.eq.s32.totalorder %s31, 0
      %p96 = por %p94, %p95
      %s97 = ssub.s32 %s33, %s40
      %p98 = scmp.eq.s32.totalorder %s97, 0
      %s100 = sadd.s32 %s99, 1
      %s101 = scalar_select %p98, %s99, %s100
      %p104 = pneg %p98
      %p105 = scmp.eq.s32.totalorder %s25, 3
      %p106 = por %p104, %p105
      %p107 = scmp.ne.s32.totalorder %s99, %s102
      %p108 = scmp.eq.s32.totalorder %s25, 0
      %p109 = por %p107, %p108
      %p110 = scmp.ne.s32.totalorder %s99, %s102
      %p111 = scmp.eq.s32.totalorder %s30, 3
      %p112 = por %p110, %p111
      %p113 = scmp.ne.s32.totalorder %s102, %s103
      %p114 = scmp.eq.s32.totalorder %s30, 0
      %p115 = por %p113, %p114
      %p116 = scmp.ne.s32.totalorder %s102, %s103
      %p117 = scmp.eq.s32.totalorder %s31, 3
      %p118 = por %p116, %p117
      %p120 = scmp.ne.s32.totalorder %s103, %s119
      %p121 = scmp.eq.s32.totalorder %s31, 0
      %p122 = por %p120, %p121
      %s123 = ssub.s32 %s33, %s40
      %p124 = scmp.eq.s32.totalorder %s123, 0
      %s126 = sadd.s32 %s125, 1
      %s127 = scalar_select %p124, %s125, %s126
      %p130 = pneg %p124
      %p131 = scmp.eq.s32.totalorder %s25, 3
      %p132 = por %p130, %p131
      %p133 = scmp.ne.s32.totalorder %s125, %s128
      %p134 = scmp.eq.s32.totalorder %s25, 0
      %p135 = por %p133, %p134
      %p136 = scmp.ne.s32.totalorder %s125, %s128
      %p137 = scmp.eq.s32.totalorder %s30, 3
      %p138 = por %p136, %p137
      %p139 = scmp.ne.s32.totalorder %s128, %s129
      %p140 = scmp.eq.s32.totalorder %s30, 0
      %p141 = por %p139, %p140
      %p142 = scmp.ne.s32.totalorder %s128, %s129
      %p143 = scmp.eq.s32.totalorder %s31, 3
      %p144 = por %p142, %p143
      %p146 = scmp.ne.s32.totalorder %s129, %s145
      %p147 = scmp.eq.s32.totalorder %s31, 0
      %p148 = por %p146, %p147
      %s149 = ssub.s32 %s33, %s40
      %p150 = scmp.eq.s32.totalorder %s149, 0
      %s152 = sadd.s32 %s151, 1
      %s153 = scalar_select %p150, %s151, %s152
      %p156 = pneg %p150
      %p157 = scmp.eq.s32.totalorder %s25, 3
      %p158 = por %p156, %p157
      %p159 = scmp.ne.s32.totalorder %s151, %s154
      %p160 = scmp.eq.s32.totalorder %s25, 0
      %p161 = por %p159, %p160
      %p162 = scmp.ne.s32.totalorder %s151, %s154
      %p163 = scmp.eq.s32.totalorder %s30, 3
      %p164 = por %p162, %p163
      %p165 = scmp.ne.s32.totalorder %s154, %s155
      %p166 = scmp.eq.s32.totalorder %s30, 0
      %p167 = por %p165, %p166
      %p168 = scmp.ne.s32.totalorder %s154, %s155
      %p169 = scmp.eq.s32.totalorder %s31, 3
      %p170 = por %p168, %p169
      %p172 = scmp.ne.s32.totalorder %s155, %s171
      %p173 = scmp.eq.s32.totalorder %s31, 0
      %p174 = por %p172, %p173
      %s175 = ssub.s32 %s33, %s40
      %p176 = scmp.eq.s32.totalorder %s175, 0
      %s178 = sadd.s32 %s177, 1
      %s179 = scalar_select %p176, %s177, %s178
      %p182 = pneg %p176
      %p183 = scmp.eq.s32.totalorder %s25, 3
      %p184 = por %p182, %p183
      %p185 = scmp.ne.s32.totalorder %s177, %s180
      %p186 = scmp.eq.s32.totalorder %s25, 0
      %p187 = por %p185, %p186
      %p188 = scmp.ne.s32.totalorder %s177, %s180
      %p189 = scmp.eq.s32.totalorder %s30, 3
      %p190 = por %p188, %p189
      %p191 = scmp.ne.s32.totalorder %s180, %s181
      %p192 = scmp.eq.s32.totalorder %s30, 0
      %p193 = por %p191, %p192
      %p194 = scmp.ne.s32.totalorder %s180, %s181
      %p195 = scmp.eq.s32.totalorder %s31, 3
      %p196 = por %p194, %p195
      %p198 = scmp.ne.s32.totalorder %s181, %s197
      %p199 = scmp.eq.s32.totalorder %s31, 0
      %p200 = por %p198, %p199
      %s201 = ssub.s32 %s33, %s40
      %p202 = scmp.eq.s32.totalorder %s201, 0
      %s204 = sadd.s32 %s203, 1
      %s205 = scalar_select %p202, %s203, %s204
      %p208 = pneg %p202
      %p209 = scmp.eq.s32.totalorder %s25, 3
      %p210 = por %p208, %p209
      %p211 = scmp.ne.s32.totalorder %s203, %s206
      %p212 = scmp.eq.s32.totalorder %s25, 0
      %p213 = por %p211, %p212
      %p214 = scmp.ne.s32.totalorder %s203, %s206
      %p215 = scmp.eq.s32.totalorder %s30, 3
      %p216 = por %p214, %p215
      %p217 = scmp.ne.s32.totalorder %s206, %s207
      %p218 = scmp.eq.s32.totalorder %s30, 0
      %p219 = por %p217, %p218
      %p220 = scmp.ne.s32.totalorder %s206, %s207
      %p221 = scmp.eq.s32.totalorder %s31, 3
      %p222 = por %p220, %p221
      %p224 = scmp.ne.s32.totalorder %s207, %s223
      %p225 = scmp.eq.s32.totalorder %s31, 0
      %p226 = por %p224, %p225
      %s227 = ssub.s32 %s33, %s40
      %p228 = scmp.eq.s32.totalorder %s227, 0
      %s230 = sadd.s32 %s229, 1
      %s231 = scalar_select %p228, %s229, %s230
      %p234 = pneg %p228
      %p235 = scmp.eq.s32.totalorder %s25, 3
      %p236 = por %p234, %p235
      %p237 = scmp.ne.s32.totalorder %s229, %s232
      %p238 = scmp.eq.s32.totalorder %s25, 0
      %p239 = por %p237, %p238
      %p240 = scmp.ne.s32.totalorder %s229, %s232
      %p241 = scmp.eq.s32.totalorder %s30, 3
      %p242 = por %p240, %p241
      %p243 = scmp.ne.s32.totalorder %s232, %s233
      %p244 = scmp.eq.s32.totalorder %s30, 0
      %p245 = por %p243, %p244
      %p246 = scmp.ne.s32.totalorder %s232, %s233
      %p247 = scmp.eq.s32.totalorder %s31, 3
      %p248 = por %p246, %p247
      %p250 = scmp.ne.s32.totalorder %s233, %s249
      %p251 = scmp.eq.s32.totalorder %s31, 0
      %p252 = por %p250, %p251
      %s253 = ssub.s32 %s33, %s40
      %p254 = scmp.eq.s32.totalorder %s253, 0
      %s256 = sadd.s32 %s255, 1
      %s257 = scalar_select %p254, %s255, %s256
      %p260 = pneg %p254
      %p261 = scmp.eq.s32.totalorder %s25, 3
      %p262 = por %p260, %p261
      %p263 = scmp.ne.s32.totalorder %s255, %s258
      %p264 = scmp.eq.s32.totalorder %s25, 0
      %p265 = por %p263, %p264
      %p266 = scmp.ne.s32.totalorder %s255, %s258
      %p267 = scmp.eq.s32.totalorder %s30, 3
      %p268 = por %p266, %p267
      %p269 = scmp.ne.s32.totalorder %s258, %s259
      %p270 = scmp.eq.s32.totalorder %s30, 0
      %p271 = por %p269, %p270
      %p272 = scmp.ne.s32.totalorder %s258, %s259
      %p273 = scmp.eq.s32.totalorder %s31, 3
      %p274 = por %p272, %p273
      %p276 = scmp.ne.s32.totalorder %s259, %s275
      %p277 = scmp.eq.s32.totalorder %s31, 0
      %p278 = por %p276, %p277
      %s279 = ssub.s32 %s33, %s40
      %p280 = scmp.eq.s32.totalorder %s279, 0
      %s282 = sadd.s32 %s281, 1
      %s283 = scalar_select %p280, %s281, %s282
      %p286 = pneg %p280
      %p287 = scmp.eq.s32.totalorder %s25, 3
      %p288 = por %p286, %p287
      %p289 = scmp.ne.s32.totalorder %s281, %s284
      %p290 = scmp.eq.s32.totalorder %s25, 0
      %p291 = por %p289, %p290
      %p292 = scmp.ne.s32.totalorder %s281, %s284
      %p293 = scmp.eq.s32.totalorder %s30, 3
      %p294 = por %p292, %p293
      %p295 = scmp.ne.s32.totalorder %s284, %s285
      %p296 = scmp.eq.s32.totalorder %s30, 0
      %p297 = por %p295, %p296
      %p298 = scmp.ne.s32.totalorder %s284, %s285
      %p299 = scmp.eq.s32.totalorder %s31, 3
      %p300 = por %p298, %p299
      %p302 = scmp.ne.s32.totalorder %s285, %s301
      %p303 = scmp.eq.s32.totalorder %s31, 0
      %p304 = por %p302, %p303
      %s305 = ssub.s32 %s33, %s40
      %p306 = scmp.eq.s32.totalorder %s305, 0
      %s308 = sadd.s32 %s307, 1
      %s309 = scalar_select %p306, %s307, %s308
      %p312 = pneg %p306
      %p313 = scmp.eq.s32.totalorder %s25, 3
      %p314 = por %p312, %p313
      %p315 = scmp.ne.s32.totalorder %s307, %s310
      %p316 = scmp.eq.s32.totalorder %s25, 0
      %p317 = por %p315, %p316
      %p318 = scmp.ne.s32.totalorder %s307, %s310
      %p319 = scmp.eq.s32.totalorder %s30, 3
      %p320 = por %p318, %p319
      %p321 = scmp.ne.s32.totalorder %s310, %s311
      %p322 = scmp.eq.s32.totalorder %s30, 0
      %p323 = por %p321, %p322
      %p324 = scmp.ne.s32.totalorder %s310, %s311
      %p325 = scmp.eq.s32.totalorder %s31, 3
      %p326 = por %p324, %p325
      %p328 = scmp.ne.s32.totalorder %s311, %s327
      %p329 = scmp.eq.s32.totalorder %s31, 0
      %p330 = por %p328, %p329
      %s331 = ssub.s32 %s33, %s40
      %p332 = scmp.eq.s32.totalorder %s331, 0
      %s334 = sadd.s32 %s333, 1
      %s335 = scalar_select %p332, %s333, %s334
      %p338 = pneg %p332
      %p339 = scmp.eq.s32.totalorder %s25, 3
      %p340 = por %p338, %p339
      %p341 = scmp.ne.s32.totalorder %s333, %s336
      %p342 = scmp.eq.s32.totalorder %s25, 0
      %p343 = por %p341, %p342
      %p344 = scmp.ne.s32.totalorder %s333, %s336
      %p345 = scmp.eq.s32.totalorder %s30, 3
      %p346 = por %p344, %p345
      %p347 = scmp.ne.s32.totalorder %s336, %s337
      %p348 = scmp.eq.s32.totalorder %s30, 0
      %p349 = por %p347, %p348
      %p350 = scmp.ne.s32.totalorder %s336, %s337
      %p351 = scmp.eq.s32.totalorder %s31, 3
      %p352 = por %p350, %p351
      %p354 = scmp.ne.s32.totalorder %s337, %s353
      %p355 = scmp.eq.s32.totalorder %s31, 0
      %p356 = por %p354, %p355
      %s358 = sadd.s32 %s357, 1
      %p361 = scmp.eq.s32.totalorder %s25, 3
      %p362 = scmp.ne.s32.totalorder %s357, %s359
      %p363 = scmp.eq.s32.totalorder %s25, 0
      %p364 = por %p362, %p363
      %p365 = scmp.ne.s32.totalorder %s357, %s359
      %p366 = scmp.eq.s32.totalorder %s30, 3
      %p367 = por %p365, %p366
      %p368 = scmp.ne.s32.totalorder %s359, %s360
      %p369 = scmp.eq.s32.totalorder %s30, 0
      %p370 = por %p368, %p369
      %p371 = scmp.ne.s32.totalorder %s359, %s360
      %p372 = scmp.eq.s32.totalorder %s31, 3
      %p373 = por %p371, %p372
      %p375 = scmp.ne.s32.totalorder %s360, %s374
      %p376 = scmp.eq.s32.totalorder %s31, 0
      %p377 = por %p375, %p376
      %s379 = sadd.s32 %s378, 1
      %p382 = scmp.eq.s32.totalorder %s25, 3
      %p383 = scmp.ne.s32.totalorder %s378, %s380
      %p384 = scmp.eq.s32.totalorder %s25, 0
      %p385 = por %p383, %p384
      %p386 = scmp.ne.s32.totalorder %s378, %s380
      %p387 = scmp.eq.s32.totalorder %s30, 3
      %p388 = por %p386, %p387
      %p389 = scmp.ne.s32.totalorder %s380, %s381
      %p390 = scmp.eq.s32.totalorder %s30, 0
      %p391 = por %p389, %p390
      %p392 = scmp.ne.s32.totalorder %s380, %s381
      %p393 = scmp.eq.s32.totalorder %s31, 3
      %p394 = por %p392, %p393
      %p396 = scmp.ne.s32.totalorder %s381, %s395
      %p397 = scmp.eq.s32.totalorder %s31, 0
      %p398 = por %p396, %p397
      %s400 = sadd.s32 %s399, 1
      %p403 = scmp.eq.s32.totalorder %s25, 3
      %p404 = scmp.ne.s32.totalorder %s399, %s401
      %p405 = scmp.eq.s32.totalorder %s25, 0
      %p406 = por %p404, %p405
      %p407 = scmp.ne.s32.totalorder %s399, %s401
      %p408 = scmp.eq.s32.totalorder %s30, 3
      %p409 = por %p407, %p408
      %p410 = scmp.ne.s32.totalorder %s401, %s402
      %p411 = scmp.eq.s32.totalorder %s30, 0
      %p412 = por %p410, %p411
      %p413 = scmp.ne.s32.totalorder %s401, %s402
      %p414 = scmp.eq.s32.totalorder %s31, 3
      %p415 = por %p413, %p414
      %p417 = scmp.ne.s32.totalorder %s402, %s416
      %p418 = scmp.eq.s32.totalorder %s31, 0
      %p419 = por %p417, %p418
      %s421 = sadd.s32 %s420, 1
      %p424 = scmp.eq.s32.totalorder %s25, 3
      %p425 = scmp.ne.s32.totalorder %s420, %s422
      %p426 = scmp.eq.s32.totalorder %s25, 0
      %p427 = por %p425, %p426
      %p428 = scmp.ne.s32.totalorder %s420, %s422
      %p429 = scmp.eq.s32.totalorder %s30, 3
      %p430 = por %p428, %p429
      %p431 = scmp.ne.s32.totalorder %s422, %s423
      %p432 = scmp.eq.s32.totalorder %s30, 0
      %p433 = por %p431, %p432
      %p434 = scmp.ne.s32.totalorder %s422, %s423
      %p435 = scmp.eq.s32.totalorder %s31, 3
      %p436 = por %p434, %p435
      %p438 = scmp.ne.s32.totalorder %s423, %s437
      %p439 = scmp.eq.s32.totalorder %s31, 0
      %p440 = por %p438, %p439
      %s441 = ssub.s32 %s32, %s44
      %p442 = scmp.eq.s32.totalorder %s441, 0
      %s444 = sadd.s32 %s443, 1
      %s445 = scalar_select %p442, %s443, %s444
      %p448 = pneg %p442
      %p449 = scmp.eq.s32.totalorder %s25, 3
      %p450 = por %p448, %p449
      %p451 = scmp.ne.s32.totalorder %s443, %s446
      %p452 = scmp.eq.s32.totalorder %s25, 0
      %p453 = por %p451, %p452
      %p454 = scmp.ne.s32.totalorder %s443, %s446
      %p455 = scmp.eq.s32.totalorder %s30, 3
      %p456 = por %p454, %p455
      %p457 = scmp.ne.s32.totalorder %s446, %s447
      %p458 = scmp.eq.s32.totalorder %s30, 0
      %p459 = por %p457, %p458
      %p460 = scmp.ne.s32.totalorder %s446, %s447
      %p461 = scmp.eq.s32.totalorder %s31, 3
      %p462 = por %p460, %p461
      %p464 = scmp.ne.s32.totalorder %s447, %s463
      %p465 = scmp.eq.s32.totalorder %s31, 0
      %p466 = por %p464, %p465
      %p467 = scmp.le.s32.totalorder 1, %s25
      %p468 = scmp.lt.s32.totalorder %s25, 5
      %p469 = pnand %p467, %p468
      %p470 = pneg %p469
      // Predicated region
      $region9: #{tpu_custom_call.1} parent=5 // pred_check
        _
      $region10: #{tpu_custom_call.1} parent=5 // pred_check_branch
        %472 = sbr.rel (%p469) target = $region12
      $region11: #{tpu_custom_call.1} parent=5 // pred_region
        %s473 = ssub.s32 %s25, 1
        // Predicated region
        $region13: #{tpu_custom_call.1} parent=11 // pred_check
          %p474 = pneg %p370
        $region14: #{tpu_custom_call.1} parent=11 // pred_check_branch
          %476 = sbr.rel (%p474) target = $region16
        $region15: #{tpu_custom_call.1} parent=11 // pred_region
          _
        $region16: #{tpu_custom_call.1} parent=11 // pred_fallthru
          _
        // Predicated region
        $region17: #{tpu_custom_call.1} parent=11 // pred_check
          %p477 = pneg %p391
        $region18: #{tpu_custom_call.1} parent=11 // pred_check_branch
          %479 = sbr.rel (%p477) target = $region20
        $region19: #{tpu_custom_call.1} parent=11 // pred_region
          _
        $region20: #{tpu_custom_call.1} parent=11 // pred_fallthru
          _
        // Predicated region
        $region21: #{tpu_custom_call.1} parent=11 // pred_check
          %p480 = pneg %p412
        $region22: #{tpu_custom_call.1} parent=11 // pred_check_branch
          %482 = sbr.rel (%p480) target = $region24
        $region23: #{tpu_custom_call.1} parent=11 // pred_region
          _
        $region24: #{tpu_custom_call.1} parent=11 // pred_fallthru
          _
        // Predicated region
        $region25: #{tpu_custom_call.1} parent=11 // pred_check
          %p483 = pneg %p433
        $region26: #{tpu_custom_call.1} parent=11 // pred_check_branch
          %485 = sbr.rel (%p483) target = $region28
        $region27: #{tpu_custom_call.1} parent=11 // pred_region
          _
        $region28: #{tpu_custom_call.1} parent=11 // pred_fallthru
          _
      $region12: #{tpu_custom_call.1} parent=5 // pred_fallthru
        _
      %p486 = scmp.lt.s32.totalorder %s25, 4
      // Predicated region
      $region29: #{tpu_custom_call.1} parent=5 // pred_check
        %p487 = pneg %p486
      $region30: #{tpu_custom_call.1} parent=5 // pred_check_branch
        %489 = sbr.rel (%p487) target = $region32
      $region31: #{tpu_custom_call.1} parent=5 // pred_region
        // Predicated region
        $region33: #{tpu_custom_call.1} parent=31 // pred_check
          %p490 = pneg %p57
        $region34: #{tpu_custom_call.1} parent=31 // pred_check_branch
          %492 = sbr.rel (%p490) target = $region36
        $region35: #{tpu_custom_call.1} parent=31 // pred_region
          %p493 = scmp.lt.s32.totalorder %s32, 1
          %s494 = scalar_select %p493, %s32, 1
          %s495 = smul.addr %s494, 3
          %s496 = smul.addr %s495, 8
          %s497 = scalar_lea.vmem %s0, %s496
        $region36: #{tpu_custom_call.1} parent=31 // pred_fallthru
          _
        // Predicated region
        $region37: #{tpu_custom_call.1} parent=31 // pred_check
          %p498 = pneg %p83
        $region38: #{tpu_custom_call.1} parent=31 // pred_check_branch
          %500 = sbr.rel (%p498) target = $region40
        $region39: #{tpu_custom_call.1} parent=31 // pred_region
          %p501 = scmp.lt.s32.totalorder %s33, 1
          %s502 = scalar_select %p501, %s33, 1
          %s503 = scalar_lea.vmem %s1, %s502
        $region40: #{tpu_custom_call.1} parent=31 // pred_fallthru
          _
        // Predicated region
        $region41: #{tpu_custom_call.1} parent=31 // pred_check
          %p504 = pneg %p109
        $region42: #{tpu_custom_call.1} parent=31 // pred_check_branch
          %506 = sbr.rel (%p504) target = $region44
        $region43: #{tpu_custom_call.1} parent=31 // pred_region
          %p507 = scmp.lt.s32.totalorder %s33, 1
          %s508 = scalar_select %p507, %s33, 1
          %s509 = scalar_lea.vmem %s2, %s508
        $region44: #{tpu_custom_call.1} parent=31 // pred_fallthru
          _
        // Predicated region
        $region45: #{tpu_custom_call.1} parent=31 // pred_check
          %p510 = pneg %p135
        $region46: #{tpu_custom_call.1} parent=31 // pred_check_branch
          %512 = sbr.rel (%p510) target = $region48
        $region47: #{tpu_custom_call.1} parent=31 // pred_region
          %p513 = scmp.lt.s32.totalorder %s33, 1
          %s514 = scalar_select %p513, %s33, 1
          %s515 = smul.addr %s514, 4
          %s516 = smul.addr %s515, 4
          %s517 = scalar_lea.vmem %s3, %s516
        $region48: #{tpu_custom_call.1} parent=31 // pred_fallthru
          _
        // Predicated region
        $region49: #{tpu_custom_call.1} parent=31 // pred_check
          %p518 = pneg %p161
        $region50: #{tpu_custom_call.1} parent=31 // pred_check_branch
          %520 = sbr.rel (%p518) target = $region52
        $region51: #{tpu_custom_call.1} parent=31 // pred_region
          %p521 = scmp.lt.s32.totalorder %s33, 1
          %s522 = scalar_select %p521, %s33, 1
          %s523 = smul.addr %s522, 4
          %s524 = smul.addr %s523, 4
          %s525 = scalar_lea.vmem %s4, %s524
        $region52: #{tpu_custom_call.1} parent=31 // pred_fallthru
          _
        // Predicated region
        $region53: #{tpu_custom_call.1} parent=31 // pred_check
          %p526 = pneg %p187
        $region54: #{tpu_custom_call.1} parent=31 // pred_check_branch
          %528 = sbr.rel (%p526) target = $region56
        $region55: #{tpu_custom_call.1} parent=31 // pred_region
          %p529 = scmp.lt.s32.totalorder %s33, 1
          %s530 = scalar_select %p529, %s33, 1
          %s531 = scalar_lea.vmem %s5, %s530
        $region56: #{tpu_custom_call.1} parent=31 // pred_fallthru
          _
        // Predicated region
        $region57: #{tpu_custom_call.1} parent=31 // pred_check
          %p532 = pneg %p213
        $region58: #{tpu_custom_call.1} parent=31 // pred_check_branch
          %534 = sbr.rel (%p532) target = $region60
        $region59: #{tpu_custom_call.1} parent=31 // pred_region
          %p535 = scmp.lt.s32.totalorder %s33, 1
          %s536 = scalar_select %p535, %s33, 1
          %s537 = scalar_lea.vmem %s6, %s536
        $region60: #{tpu_custom_call.1} parent=31 // pred_fallthru
          _
        // Predicated region
        $region61: #{tpu_custom_call.1} parent=31 // pred_check
          %p538 = pneg %p239
        $region62: #{tpu_custom_call.1} parent=31 // pred_check_branch
          %540 = sbr.rel (%p538) target = $region64
        $region63: #{tpu_custom_call.1} parent=31 // pred_region
          %p541 = scmp.lt.s32.totalorder %s33, 1
          %s542 = scalar_select %p541, %s33, 1
          %s543 = scalar_lea.vmem %s7, %s542
        $region64: #{tpu_custom_call.1} parent=31 // pred_fallthru
          _
        // Predicated region
        $region65: #{tpu_custom_call.1} parent=31 // pred_check
          %p544 = pneg %p265
        $region66: #{tpu_custom_call.1} parent=31 // pred_check_branch
          %546 = sbr.rel (%p544) target = $region68
        $region67: #{tpu_custom_call.1} parent=31 // pred_region
          %p547 = scmp.lt.s32.totalorder %s33, 1
          %s548 = scalar_select %p547, %s33, 1
          %s549 = smul.addr %s548, 4
          %s550 = smul.addr %s549, 4
          %s551 = scalar_lea.vmem %s8, %s550
        $region68: #{tpu_custom_call.1} parent=31 // pred_fallthru
          _
        // Predicated region
        $region69: #{tpu_custom_call.1} parent=31 // pred_check
          %p552 = pneg %p291
        $region70: #{tpu_custom_call.1} parent=31 // pred_check_branch
          %554 = sbr.rel (%p552) target = $region72
        $region71: #{tpu_custom_call.1} parent=31 // pred_region
          %p555 = scmp.lt.s32.totalorder %s33, 1
          %s556 = scalar_select %p555, %s33, 1
          %s557 = scalar_lea.vmem %s9, %s556
        $region72: #{tpu_custom_call.1} parent=31 // pred_fallthru
          _
        // Predicated region
        $region73: #{tpu_custom_call.1} parent=31 // pred_check
          %p558 = pneg %p317
        $region74: #{tpu_custom_call.1} parent=31 // pred_check_branch
          %560 = sbr.rel (%p558) target = $region76
        $region75: #{tpu_custom_call.1} parent=31 // pred_region
          %p561 = scmp.lt.s32.totalorder %s33, 1
          %s562 = scalar_select %p561, %s33, 1
          %s563 = smul.addr %s562, 8
          %s564 = smul.addr %s563, 4
          %s565 = scalar_lea.vmem %s10, %s564
        $region76: #{tpu_custom_call.1} parent=31 // pred_fallthru
          _
        // Predicated region
        $region77: #{tpu_custom_call.1} parent=31 // pred_check
          %p566 = pneg %p343
        $region78: #{tpu_custom_call.1} parent=31 // pred_check_branch
          %568 = sbr.rel (%p566) target = $region80
        $region79: #{tpu_custom_call.1} parent=31 // pred_region
          %p569 = scmp.lt.s32.totalorder %s33, 1
          %s570 = scalar_select %p569, %s33, 1
          %s571 = scalar_lea.vmem %s11, %s570
        $region80: #{tpu_custom_call.1} parent=31 // pred_fallthru
          _
      $region32: #{tpu_custom_call.1} parent=5 // pred_fallthru
        _
      %p572 = scmp.le.s32.totalorder 1, %s25
      %p573 = scmp.lt.s32.totalorder %s25, 5
      %p574 = pnand %p572, %p573
      %p575 = pneg %p574
      // Predicated region
      $region81: #{tpu_custom_call.1} parent=5 // pred_check
        _
      $region82: #{tpu_custom_call.1} parent=5 // pred_check_branch
        %577 = sbr.rel (%p574) target = $region84
      $region83: #{tpu_custom_call.1} parent=5 // pred_region
        %s578 = ssub.s32 %s25, 1
        %p579 = scmp.lt.s32.totalorder %s34, 1
        %s580 = scalar_select %p579, %s34, 1
        %s581 = smul.addr %s580, 3
        %s582 = smul.addr %s581, 8
        %s583 = scalar_lea.vmem %s0, %s582
        %p584 = pneg %p63
        %p585 = pneg %p60
        %p586 = scmp.lt.s32.totalorder %s35, 1
        %s587 = scalar_select %p586, %s35, 1
        %s588 = scalar_lea.vmem %s1, %s587
        %p589 = pneg %p89
        %p590 = pneg %p86
        %p591 = scmp.lt.s32.totalorder %s35, 1
        %s592 = scalar_select %p591, %s35, 1
        %s593 = scalar_lea.vmem %s2, %s592
        %p594 = pneg %p115
        %p595 = pneg %p112
        %p596 = scmp.lt.s32.totalorder %s35, 1
        %s597 = scalar_select %p596, %s35, 1
        %s598 = smul.addr %s597, 4
        %s599 = smul.addr %s598, 4
        %s600 = scalar_lea.vmem %s3, %s599
        %p601 = pneg %p141
        %p602 = pneg %p138
        %p603 = scmp.lt.s32.totalorder %s35, 1
        %s604 = scalar_select %p603, %s35, 1
        %s605 = smul.addr %s604, 4
        %s606 = smul.addr %s605, 4
        %s607 = scalar_lea.vmem %s4, %s606
        %p608 = pneg %p167
        %p609 = pneg %p164
        %p610 = scmp.lt.s32.totalorder %s35, 1
        %s611 = scalar_select %p610, %s35, 1
        %s612 = scalar_lea.vmem %s5, %s611
        %p613 = pneg %p193
        %p614 = pneg %p190
        %p615 = scmp.lt.s32.totalorder %s35, 1
        %s616 = scalar_select %p615, %s35, 1
        %s617 = scalar_lea.vmem %s6, %s616
        %p618 = pneg %p219
        %p619 = pneg %p216
        %p620 = scmp.lt.s32.totalorder %s35, 1
        %s621 = scalar_select %p620, %s35, 1
        %s622 = scalar_lea.vmem %s7, %s621
        %p623 = pneg %p245
        %p624 = pneg %p242
        %p625 = scmp.lt.s32.totalorder %s35, 1
        %s626 = scalar_select %p625, %s35, 1
        %s627 = smul.addr %s626, 4
        %s628 = smul.addr %s627, 4
        %s629 = scalar_lea.vmem %s8, %s628
        %p630 = pneg %p271
        %p631 = pneg %p268
        %p632 = scmp.lt.s32.totalorder %s35, 1
        %s633 = scalar_select %p632, %s35, 1
        %s634 = scalar_lea.vmem %s9, %s633
        %p635 = pneg %p297
        %p636 = pneg %p294
        %p637 = scmp.lt.s32.totalorder %s35, 1
        %s638 = scalar_select %p637, %s35, 1
        %s639 = smul.addr %s638, 8
        %s640 = smul.addr %s639, 4
        %s641 = scalar_lea.vmem %s10, %s640
        %p642 = pneg %p323
        %p643 = pneg %p320
        %p644 = scmp.lt.s32.totalorder %s35, 1
        %s645 = scalar_select %p644, %s35, 1
        %s646 = scalar_lea.vmem %s11, %s645
        %p647 = pneg %p349
        %p648 = pneg %p346
        %p649 = pneg %p370
        %p650 = pneg %p367
        %p651 = pneg %p391
        %p652 = pneg %p388
        %p653 = pneg %p412
        %p654 = pneg %p409
        %p655 = pneg %p433
        %p656 = pneg %p430
        %p657 = pneg %p459
        %p658 = pneg %p456
        %s659 = sand.u32 %s446, 1
        %s660 = scalar_lea.sflag [#allocation4], %s659
        %s661 = sand.u32 %s446, 1
        %s662 = scalar_lea.vmem [#allocation3], %s661
        %p663 = scmp.lt.s32.totalorder %s34, 1
        %s664 = scalar_select %p663, %s34, 1
        %s665 = smul.addr %s664, 3
        %s666 = smul.addr %s665, 8
        %s667 = scalar_lea.vmem %s0, %s666
        %p668 = scmp.lt.s32.totalorder %s35, 1
        %s669 = scalar_select %p668, %s35, 1
        %s670 = scalar_lea.vmem %s1, %s669
        %p671 = scmp.lt.s32.totalorder %s35, 1
        %s672 = scalar_select %p671, %s35, 1
        %s673 = scalar_lea.vmem %s2, %s672
        %p674 = scmp.lt.s32.totalorder %s35, 1
        %s675 = scalar_select %p674, %s35, 1
        %s676 = smul.addr %s675, 4
        %s677 = smul.addr %s676, 4
        %s678 = scalar_lea.vmem %s3, %s677
        %p679 = scmp.lt.s32.totalorder %s35, 1
        %s680 = scalar_select %p679, %s35, 1
        %s681 = smul.addr %s680, 4
        %s682 = smul.addr %s681, 4
        %s683 = scalar_lea.vmem %s4, %s682
        %p684 = scmp.lt.s32.totalorder %s35, 1
        %s685 = scalar_select %p684, %s35, 1
        %s686 = scalar_lea.vmem %s5, %s685
        %p687 = scmp.lt.s32.totalorder %s35, 1
        %s688 = scalar_select %p687, %s35, 1
        %s689 = scalar_lea.vmem %s6, %s688
        %p690 = scmp.lt.s32.totalorder %s35, 1
        %s691 = scalar_select %p690, %s35, 1
        %s692 = scalar_lea.vmem %s7, %s691
        %p693 = scmp.lt.s32.totalorder %s35, 1
        %s694 = scalar_select %p693, %s35, 1
        %s695 = smul.addr %s694, 4
        %s696 = smul.addr %s695, 4
        %s697 = scalar_lea.vmem %s8, %s696
        %p698 = scmp.lt.s32.totalorder %s35, 1
        %s699 = scalar_select %p698, %s35, 1
        %s700 = scalar_lea.vmem %s9, %s699
        %p701 = scmp.lt.s32.totalorder %s35, 1
        %s702 = scalar_select %p701, %s35, 1
        %s703 = smul.addr %s702, 8
        %s704 = smul.addr %s703, 4
        %s705 = scalar_lea.vmem %s10, %s704
        %p706 = scmp.lt.s32.totalorder %s35, 1
        %s707 = scalar_select %p706, %s35, 1
        %s708 = scalar_lea.vmem %s11, %s707
        %p710 = scmp.eq.s32.totalorder %s35, 0
        // Predicated region
        $region85: #{tpu_custom_call.1} parent=83 // pred_check
          %p711 = pneg %p710
        $region86: #{tpu_custom_call.1} parent=83 // pred_check_branch
          %713 = sbr.rel (%p711) target = $region88
        $region87: #{tpu_custom_call.1} parent=83 // pred_region
          %v714 = vld [vmem:[%s667] sm:$0xff]
          %v715 = vld [vmem:[%s667 + $0x8] sm:$0xff]
          %v716 = vld [vmem:[%s667 + $0x10] sm:$0x1]
          %vm717 = vcmask 261120
          %718 = vst.msk [vmem:[#allocation2] sm:$0xff] %vm717, %v714
          %719 = vst.msk [vmem:[#allocation2 + $0x8] sm:$0xff] %vm717, %v715
          %vm720 = vcmask 253952
          %721 = vst.msk [vmem:[#allocation2 + $0x10] sm:$0x1] %vm720, %v716
        $region88: #{tpu_custom_call.1} parent=83 // pred_fallthru
          _
        %v722 = vld [vmem:[#allocation2] sm:$0xff]
        %v723 = vld [vmem:[#allocation2 + $0x8] sm:$0xff]
        %v724 = vld [vmem:[#allocation2 + $0x10] sm:$0x1]
        %v725 = vld [vmem:[%s670] sm:$0x1]
        %v726 = vld [vmem:[%s673] sm:$0x1]
        %vm727 = vcmask 261120
        %v728 = vsel %vm727, %v722, 0.0
        %729 = vadd.xlane.f32.xlu0 %v728
        %v730 = vpop.xlane.xlu0 %729
        %v731 = vsel %vm727, %v723, 0.0
        %732 = vadd.xlane.f32.xlu0 %v731
        %v733 = vpop.xlane.xlu0 %732
        %vm734 = vcmask 253952
        %v735 = vsel %vm734, %v724, 0.0
        %736 = vadd.xlane.f32.xlu0 %v735
        %v737 = vpop.xlane.xlu0 %736
        %v738 = vrcp.pop 32.0
        %v739 = vmul.f32 %v730, %v738
        %v740 = vmul.f32 %v733, %v738
        %v741 = vmul.f32 %v737, %v738
        %v742 = vsub.f32 %v722, %v739
        %v743 = vsub.f32 %v723, %v740
        %v744 = vsub.f32 %v724, %v741
        %v745 = vmul.f32 %v742, %v742
        %v746 = vmul.f32 %v743, %v743
        %v747 = vmul.f32 %v744, %v744
        %v748 = vsel %vm727, %v745, 0.0
        %749 = vadd.xlane.f32.xlu0 %v748
        %v750 = vpop.xlane.xlu0 %749
        %v751 = vsel %vm727, %v746, 0.0
        %752 = vadd.xlane.f32.xlu0 %v751
        %v753 = vpop.xlane.xlu0 %752
        %v754 = vsel %vm734, %v747, 0.0
        %755 = vadd.xlane.f32.xlu0 %v754
        %v756 = vpop.xlane.xlu0 %755
        %v757 = vmul.f32 %v750, %v738
        %v758 = vmul.f32 %v753, %v738
        %v759 = vmul.f32 %v756, %v738
        %v760 = vadd.f32 %v757, 1e-05
        %v761 = vadd.f32 %v758, 1e-05
        %v762 = vadd.f32 %v759, 1e-05
        %v763 = vrsqrt.pop %v760
        %v764 = vrsqrt.pop %v761
        %v765 = vrsqrt.pop %v762
        %v766 = vmul.f32 %v742, %v763
        %v767 = vmul.f32 %v743, %v764
        %v768 = vmul.f32 %v744, %v765
        %v770 = vlaneseq
        %v771 = vshrl.u32 %v770, 7
        %v772 = vsub.s32 0, %v771
        %v773 = vrot.slane %v725, %v772
        %v775 = vmul.f32 %v766, %v773
        %v776 = vmul.f32 %v767, %v773
        %v777 = vmul.f32 %v768, %v773
        %v779 = vlaneseq
        %v780 = vshrl.u32 %v779, 7
        %v781 = vsub.s32 0, %v780
        %v782 = vrot.slane %v726, %v781
        %v784 = vadd.f32 %v775, %v782
        %v785 = vadd.f32 %v776, %v782
        %v786 = vadd.f32 %v777, %v782
        %v787 = vpack.c.bf16 %v785, %v784
        %v788 = vpack.c.bf16 %v786, %v786
        %v789 = vld [vmem:[%s678] sm:$0xf]
        %v790 = vld [vmem:[%s678 + $0x4] sm:$0xf]
        %v791 = vld [vmem:[%s678 + $0x8] sm:$0xf]
        %v792 = vld [vmem:[%s678 + $0xc] sm:$0xf]
        %v797 = vunpack.c.l.b16 %v789
        %v798 = vunpack.c.l.b16 %v790
        %v799 = vunpack.c.l.b16 %v791
        %v800 = vunpack.c.l.b16 %v792
        %v801 = vpack.c.b16 %v798, %v797
        %v802 = vpack.c.b16 %v800, %v799
        %v806 = vsel %vm727, %v787, 0
        %v809 = vsel %vm727, %v788, 0
        %811 = vmatprep.subr.bf16.mxu0 0
        %812 = vmatpush1.bf16.msra.mxu0 %v801
        %813 = vmatprep.subr.bf16.mxu0 0
        %814 = vmatpush1.bf16.msra.mxu0 %v802
        %815 = vmatprep.subr.bf16.mxu0 0
        %816 = vmatpush1.bf16.msra.mxu0 0
        %817 = vmatprep.subr.bf16.mxu0 0
        %818 = vmatpush1.bf16.msra.mxu0 0
        %819 = vmatprep.subr.bf16.mxu0 0
        %820 = vmatpush1.bf16.msra.mxu0 0
        %821 = vmatprep.subr.bf16.mxu0 0
        %822 = vmatpush1.bf16.msra.mxu0 0
        %823 = vmatprep.subr.bf16.mxu0 0
        %824 = vmatpush1.bf16.msra.mxu0 0
        %825 = vmatprep.subr.bf16.mxu0 0
        %826 = vmatpush1.bf16.msra.mxu0 0
        %827 = vmatprep.subr.bf16.mxu0 0
        %828 = vmatpush1.bf16.msra.mxu0 0
        %829 = vmatprep.subr.bf16.mxu0 0
        %830 = vmatpush1.bf16.msra.mxu0 0
        %831 = vmatprep.subr.bf16.mxu0 0
        %832 = vmatpush1.bf16.msra.mxu0 0
        %833 = vmatprep.subr.bf16.mxu0 0
        %834 = vmatpush1.bf16.msra.mxu0 0
        %835 = vmatprep.subr.bf16.mxu0 0
        %836 = vmatpush1.bf16.msra.mxu0 0
        %837 = vmatprep.subr.bf16.mxu0 0
        %838 = vmatpush1.bf16.msra.mxu0 0
        %839 = vmatprep.subr.bf16.mxu0 0
        %840 = vmatpush1.bf16.msra.mxu0 0
        %841 = vmatprep.subr.bf16.mxu0 0
        %842 = vmatpush1.bf16.msra.mxu0 0
        %843 = vmatprep.mubr.bf16.mxu0 0
        %844 = vmatmul.mubr.bf16.gmra.mrb[0].mxu0 %v806
        %v845 = vpop.f32.mrb[0].mxu0
        %v846 = vadd.f32 0.0, %v845
        %v847 = vpop.f32.mrb[0].mxu0
        %v848 = vpop.f32.mrb[0].mxu0
        %v849 = vadd.f32 0.0, %v848
        %v850 = vpop.f32.mrb[0].mxu0
        %851 = vmatprep.mubr.bf16.mxu0 0
        %852 = vmatmul.mubr.bf16.gmra.mrb[0].mxu0 %v809
        %v853 = vpop.f32.mrb[0].mxu0
        %v854 = vadd.f32 0.0, %v853
        %v855 = vpop.f32.mrb[0].mxu0
        %v856 = vpop.f32.mrb[0].mxu0
        %v857 = vpop.f32.mrb[0].mxu0
        %858 = vdwg.mxu0
        %v859 = vpack.c.bf16 %v849, %v846
        %v860 = vpack.c.bf16 %v854, %v854
        %863 = vrot.lane.b32.xlu0 %v859, 96
        %v864 = vpop.permute.xlu0 %863
        %865 = vrot.lane.b32.xlu0 %v860, 96
        %v866 = vpop.permute.xlu0 %865
        %vm867 = vcmask 64512
        %v869 = vsel %vm867, %v859, 0
        %v872 = vsel %vm867, %v860, 0
        %v875 = vsel %vm867, %v864, 0
        %v878 = vsel %vm867, %v866, 0
        %880 = vmatprep.subr.bf16.mxu0 0
        %881 = vmatpush1.bf16.xpose.msra.mxu0 %v875
        %882 = vmatprep.subr.bf16.mxu0 0
        %883 = vmatpush1.bf16.xpose.msra.mxu0 %v878
        %884 = vmatprep.subr.bf16.mxu0 0
        %885 = vmatpush1.bf16.xpose.msra.mxu0 0
        %886 = vmatprep.subr.bf16.mxu0 0
        %887 = vmatpush1.bf16.xpose.msra.mxu0 0
        %888 = vmatprep.subr.bf16.mxu0 0
        %889 = vmatpush1.bf16.xpose.msra.mxu0 0
        %890 = vmatprep.subr.bf16.mxu0 0
        %891 = vmatpush1.bf16.xpose.msra.mxu0 0
        %892 = vmatprep.subr.bf16.mxu0 0
        %893 = vmatpush1.bf16.xpose.msra.mxu0 0
        %894 = vmatprep.subr.bf16.mxu0 0
        %895 = vmatpush1.bf16.xpose.msra.mxu0 0
        %896 = vmatprep.subr.bf16.mxu0 0
        %897 = vmatpush1.bf16.xpose.msra.mxu0 0
        %898 = vmatprep.subr.bf16.mxu0 0
        %899 = vmatpush1.bf16.xpose.msra.mxu0 0
        %900 = vmatprep.subr.bf16.mxu0 0
        %901 = vmatpush1.bf16.xpose.msra.mxu0 0
        %902 = vmatprep.subr.bf16.mxu0 0
        %903 = vmatpush1.bf16.xpose.msra.mxu0 0
        %904 = vmatprep.subr.bf16.mxu0 0
        %905 = vmatpush1.bf16.xpose.msra.mxu0 0
        %906 = vmatprep.subr.bf16.mxu0 0
        %907 = vmatpush1.bf16.xpose.msra.mxu0 0
        %908 = vmatprep.subr.bf16.mxu0 0
        %909 = vmatpush1.bf16.xpose.msra.mxu0 0
        %910 = vmatprep.subr.bf16.mxu0 0
        %911 = vmatpush1.bf16.xpose.msra.mxu0 0
        %912 = vmatprep.mubr.bf16.mxu0 0
        %913 = vmatmul.mubr.bf16.gmra.mrb[0].mxu0 %v869
        %v914 = vpop.f32.mrb[0].mxu0
        %v915 = vadd.f32 0.0, %v914
        %v916 = vpop.f32.mrb[0].mxu0
        %v917 = vpop.f32.mrb[0].mxu0
        %v918 = vadd.f32 0.0, %v917
        %v919 = vpop.f32.mrb[0].mxu0
        %920 = vmatprep.mubr.bf16.mxu0 0
        %921 = vmatmul.mubr.bf16.gmra.mrb[0].mxu0 %v872
        %v922 = vpop.f32.mrb[0].mxu0
        %v923 = vadd.f32 0.0, %v922
        %v924 = vpop.f32.mrb[0].mxu0
        %v925 = vpop.f32.mrb[0].mxu0
        %v926 = vpop.f32.mrb[0].mxu0
        %927 = vdwg.mxu0
        %vm928 = vcmask 138240
        %v929 = vsel %vm928, %v915, -inf
        %930 = vmax.xlane.f32.xlu0 %v929
        %v931 = vpop.xlane.xlu0 %930
        %v932 = vsel %vm928, %v918, -inf
        %933 = vmax.xlane.f32.xlu0 %v932
        %v934 = vpop.xlane.xlu0 %933
        %vm935 = vcmask 131072
        %v936 = vsel %vm935, %v923, -inf
        %937 = vmax.xlane.f32.xlu0 %v936
        %v938 = vpop.xlane.xlu0 %937
        %v939 = vsub.f32 %v915, %v931
        %v940 = vsub.f32 %v918, %v934
        %v941 = vsub.f32 %v923, %v938
        %v942 = vmul.f32 %v939, 1.442695
        %v943 = vpow.pop %v942
        %v944 = vmul.f32 %v940, 1.442695
        %v945 = vpow.pop %v944
        %v946 = vmul.f32 %v941, 1.442695
        %v947 = vpow.pop %v946
        %v948 = vsel %vm928, %v943, 0.0
        %949 = vadd.xlane.f32.xlu0 %v948
        %v950 = vpop.xlane.xlu0 %949
        %v951 = vsel %vm928, %v945, 0.0
        %952 = vadd.xlane.f32.xlu0 %v951
        %v953 = vpop.xlane.xlu0 %952
        %v954 = vsel %vm935, %v947, 0.0
        %955 = vadd.xlane.f32.xlu0 %v954
        %v956 = vpop.xlane.xlu0 %955
        %v957 = vrcp.pop %v950
        %v958 = vrcp.pop %v953
        %v959 = vrcp.pop %v956
        %v960 = vmul.f32 %v943, %v957
        %v961 = vmul.f32 %v945, %v958
        %v962 = vmul.f32 %v947, %v959
        %v963 = vpack.c.bf16 %v961, %v960
        %v964 = vpack.c.bf16 %v962, %v962
        %965 = vrot.lane.b32.xlu0 %v859, 64
        %v966 = vpop.permute.xlu0 %965
        %967 = vrot.lane.b32.xlu0 %v860, 64
        %v968 = vpop.permute.xlu0 %967
        %v971 = vsel %vm928, %v963, 0
        %v974 = vsel %vm928, %v964, 0
        %vm976 = vcmask 1040384
        %v977 = vsel 0, 4294967295, 65535
        %v978 = vsel %vm976, %v977, 0
        %v980 = vand.u32 %v968, %v978
        %982 = vmatprep.subr.bf16.mxu0 0
        %983 = vmatpush1.bf16.msra.mxu0 %v966
        %984 = vmatprep.subr.bf16.mxu0 0
        %985 = vmatpush1.bf16.msra.mxu0 %v980
        %986 = vmatprep.subr.bf16.mxu0 0
        %987 = vmatpush1.bf16.msra.mxu0 0
        %988 = vmatprep.subr.bf16.mxu0 0
        %989 = vmatpush1.bf16.msra.mxu0 0
        %990 = vmatprep.subr.bf16.mxu0 0
        %991 = vmatpush1.bf16.msra.mxu0 0
        %992 = vmatprep.subr.bf16.mxu0 0
        %993 = vmatpush1.bf16.msra.mxu0 0
        %994 = vmatprep.subr.bf16.mxu0 0
        %995 = vmatpush1.bf16.msra.mxu0 0
        %996 = vmatprep.subr.bf16.mxu0 0
        %997 = vmatpush1.bf16.msra.mxu0 0
        %998 = vmatprep.subr.bf16.mxu0 0
        %999 = vmatpush1.bf16.msra.mxu0 0
        %1000 = vmatprep.subr.bf16.mxu0 0
        %1001 = vmatpush1.bf16.msra.mxu0 0
        %1002 = vmatprep.subr.bf16.mxu0 0
        %1003 = vmatpush1.bf16.msra.mxu0 0
        %1004 = vmatprep.subr.bf16.mxu0 0
        %1005 = vmatpush1.bf16.msra.mxu0 0
        %1006 = vmatprep.subr.bf16.mxu0 0
        %1007 = vmatpush1.bf16.msra.mxu0 0
        %1008 = vmatprep.subr.bf16.mxu0 0
        %1009 = vmatpush1.bf16.msra.mxu0 0
        %1010 = vmatprep.subr.bf16.mxu0 0
        %1011 = vmatpush1.bf16.msra.mxu0 0
        %1012 = vmatprep.subr.bf16.mxu0 0
        %1013 = vmatpush1.bf16.msra.mxu0 0
        %1014 = vmatprep.mubr.bf16.mxu0 0
        %1015 = vmatmul.mubr.bf16.gmra.mrb[0].mxu0 %v971
        %v1016 = vpop.f32.mrb[0].mxu0
        %v1017 = vadd.f32 0.0, %v1016
        %v1018 = vpop.f32.mrb[0].mxu0
        %v1019 = vpop.f32.mrb[0].mxu0
        %v1020 = vadd.f32 0.0, %v1019
        %v1021 = vpop.f32.mrb[0].mxu0
        %1022 = vmatprep.mubr.bf16.mxu0 0
        %1023 = vmatmul.mubr.bf16.gmra.mrb[0].mxu0 %v974
        %v1024 = vpop.f32.mrb[0].mxu0
        %v1025 = vadd.f32 0.0, %v1024
        %v1026 = vpop.f32.mrb[0].mxu0
        %v1027 = vpop.f32.mrb[0].mxu0
        %v1028 = vpop.f32.mrb[0].mxu0
        %1029 = vdwg.mxu0
        %1030 = vrot.lane.b32.xlu0 %v859, 120
        %v1031 = vpop.permute.xlu0 %1030
        %1032 = vrot.lane.b32.xlu0 %v860, 120
        %v1033 = vpop.permute.xlu0 %1032
        %1034 = vrot.lane.b32.xlu0 %v859, 88
        %v1035 = vpop.permute.xlu0 %1034
        %1036 = vrot.lane.b32.xlu0 %v860, 88
        %v1037 = vpop.permute.xlu0 %1036
        %v1039 = vsel %vm867, %v1031, 0
        %v1042 = vsel %vm867, %v1033, 0
        %v1045 = vsel %vm867, %v1035, 0
        %v1048 = vsel %vm867, %v1037, 0
        %1050 = vmatprep.subr.bf16.mxu0 0
        %1051 = vmatpush1.bf16.xpose.msra.mxu0 %v1045
        %1052 = vmatprep.subr.bf16.mxu0 0
        %1053 = vmatpush1.bf16.xpose.msra.mxu0 %v1048
        %1054 = vmatprep.subr.bf16.mxu0 0
        %1055 = vmatpush1.bf16.xpose.msra.mxu0 0
        %1056 = vmatprep.subr.bf16.mxu0 0
        %1057 = vmatpush1.bf16.xpose.msra.mxu0 0
        %1058 = vmatprep.subr.bf16.mxu0 0
        %1059 = vmatpush1.bf16.xpose.msra.mxu0 0
        %1060 = vmatprep.subr.bf16.mxu0 0
        %1061 = vmatpush1.bf16.xpose.msra.mxu0 0
        %1062 = vmatprep.subr.bf16.mxu0 0
        %1063 = vmatpush1.bf16.xpose.msra.mxu0 0
        %1064 = vmatprep.subr.bf16.mxu0 0
        %1065 = vmatpush1.bf16.xpose.msra.mxu0 0
        %1066 = vmatprep.subr.bf16.mxu0 0
        %1067 = vmatpush1.bf16.xpose.msra.mxu0 0
        %1068 = vmatprep.subr.bf16.mxu0 0
        %1069 = vmatpush1.bf16.xpose.msra.mxu0 0
        %1070 = vmatprep.subr.bf16.mxu0 0
        %1071 = vmatpush1.bf16.xpose.msra.mxu0 0
        %1072 = vmatprep.subr.bf16.mxu0 0
        %1073 = vmatpush1.bf16.xpose.msra.mxu0 0
        %1074 = vmatprep.subr.bf16.mxu0 0
        %1075 = vmatpush1.bf16.xpose.msra.mxu0 0
        %1076 = vmatprep.subr.bf16.mxu0 0
        %1077 = vmatpush1.bf16.xpose.msra.mxu0 0
        %1078 = vmatprep.subr.bf16.mxu0 0
        %1079 = vmatpush1.bf16.xpose.msra.mxu0 0
        %1080 = vmatprep.subr.bf16.mxu0 0
        %1081 = vmatpush1.bf16.xpose.msra.mxu0 0
        %1082 = vmatprep.mubr.bf16.mxu0 0
        %1083 = vmatmul.mubr.bf16.gmra.mrb[0].mxu0 %v1039
        %v1084 = vpop.f32.mrb[0].mxu0
        %v1085 = vadd.f32 0.0, %v1084
        %v1086 = vpop.f32.mrb[0].mxu0
        %v1087 = vpop.f32.mrb[0].mxu0
        %v1088 = vadd.f32 0.0, %v1087
        %v1089 = vpop.f32.mrb[0].mxu0
        %1090 = vmatprep.mubr.bf16.mxu0 0
        %1091 = vmatmul.mubr.bf16.gmra.mrb[0].mxu0 %v1042
        %v1092 = vpop.f32.mrb[0].mxu0
        %v1093 = vadd.f32 0.0, %v1092
        %v1094 = vpop.f32.mrb[0].mxu0
        %v1095 = vpop.f32.mrb[0].mxu0
        %v1096 = vpop.f32.mrb[0].mxu0
        %1097 = vdwg.mxu0
        %v1098 = vsel %vm928, %v1085, -inf
        %1099 = vmax.xlane.f32.xlu0 %v1098
        %v1100 = vpop.xlane.xlu0 %1099
        %v1101 = vsel %vm928, %v1088, -inf
        %1102 = vmax.xlane.f32.xlu0 %v1101
        %v1103 = vpop.xlane.xlu0 %1102
        %v1104 = vsel %vm935, %v1093, -inf
        %1105 = vmax.xlane.f32.xlu0 %v1104
        %v1106 = vpop.xlane.xlu0 %1105
        %v1107 = vsub.f32 %v1085, %v1100
        %v1108 = vsub.f32 %v1088, %v1103
        %v1109 = vsub.f32 %v1093, %v1106
        %v1110 = vmul.f32 %v1107, 1.442695
        %v1111 = vpow.pop %v1110
        %v1112 = vmul.f32 %v1108, 1.442695
        %v1113 = vpow.pop %v1112
        %v1114 = vmul.f32 %v1109, 1.442695
        %v1115 = vpow.pop %v1114
        %v1116 = vsel %vm928, %v1111, 0.0
        %1117 = vadd.xlane.f32.xlu0 %v1116
        %v1118 = vpop.xlane.xlu0 %1117
        %v1119 = vsel %vm928, %v1113, 0.0
        %1120 = vadd.xlane.f32.xlu0 %v1119
        %v1121 = vpop.xlane.xlu0 %1120
        %v1122 = vsel %vm935, %v1115, 0.0
        %1123 = vadd.xlane.f32.xlu0 %v1122
        %v1124 = vpop.xlane.xlu0 %1123
        %v1125 = vrcp.pop %v1118
        %v1126 = vrcp.pop %v1121
        %v1127 = vrcp.pop %v1124
        %v1128 = vmul.f32 %v1111, %v1125
        %v1129 = vmul.f32 %v1113, %v1126
        %v1130 = vmul.f32 %v1115, %v1127
        %v1131 = vpack.c.bf16 %v1129, %v1128
        %v1132 = vpack.c.bf16 %v1130, %v1130
        %1133 = vrot.lane.b32.xlu0 %v859, 56
        %v1134 = vpop.permute.xlu0 %1133
        %1135 = vrot.lane.b32.xlu0 %v860, 56
        %v1136 = vpop.permute.xlu0 %1135
        %v1139 = vsel %vm928, %v1131, 0
        %v1142 = vsel %vm928, %v1132, 0
        %v1145 = vand.u32 %v1136, %v978
        %1147 = vmatprep.subr.bf16.mxu0 0
        %1148 = vmatpush1.bf16.msra.mxu0 %v1134
        %1149 = vmatprep.subr.bf16.mxu0 0
        %1150 = vmatpush1.bf16.msra.mxu0 %v1145
        %1151 = vmatprep.subr.bf16.mxu0 0
        %1152 = vmatpush1.bf16.msra.mxu0 0
        %1153 = vmatprep.subr.bf16.mxu0 0
        %1154 = vmatpush1.bf16.msra.mxu0 0
        %1155 = vmatprep.subr.bf16.mxu0 0
        %1156 = vmatpush1.bf16.msra.mxu0 0
        %1157 = vmatprep.subr.bf16.mxu0 0
        %1158 = vmatpush1.bf16.msra.mxu0 0
        %1159 = vmatprep.subr.bf16.mxu0 0
        %1160 = vmatpush1.bf16.msra.mxu0 0
        %1161 = vmatprep.subr.bf16.mxu0 0
        %1162 = vmatpush1.bf16.msra.mxu0 0
        %1163 = vmatprep.subr.bf16.mxu0 0
        %1164 = vmatpush1.bf16.msra.mxu0 0
        %1165 = vmatprep.subr.bf16.mxu0 0
        %1166 = vmatpush1.bf16.msra.mxu0 0
        %1167 = vmatprep.subr.bf16.mxu0 0
        %1168 = vmatpush1.bf16.msra.mxu0 0
        %1169 = vmatprep.subr.bf16.mxu0 0
        %1170 = vmatpush1.bf16.msra.mxu0 0
        %1171 = vmatprep.subr.bf16.mxu0 0
        %1172 = vmatpush1.bf16.msra.mxu0 0
        %1173 = vmatprep.subr.bf16.mxu0 0
        %1174 = vmatpush1.bf16.msra.mxu0 0
        %1175 = vmatprep.subr.bf16.mxu0 0
        %1176 = vmatpush1.bf16.msra.mxu0 0
        %1177 = vmatprep.subr.bf16.mxu0 0
        %1178 = vmatpush1.bf16.msra.mxu0 0
        %1179 = vmatprep.mubr.bf16.mxu0 0
        %1180 = vmatmul.mubr.bf16.gmra.mrb[0].mxu0 %v1139
        %v1181 = vpop.f32.mrb[0].mxu0
        %v1182 = vadd.f32 0.0, %v1181
        %v1183 = vpop.f32.mrb[0].mxu0
        %v1184 = vpop.f32.mrb[0].mxu0
        %v1185 = vadd.f32 0.0, %v1184
        %v1186 = vpop.f32.mrb[0].mxu0
        %1187 = vmatprep.mubr.bf16.mxu0 0
        %1188 = vmatmul.mubr.bf16.gmra.mrb[0].mxu0 %v1142
        %v1189 = vpop.f32.mrb[0].mxu0
        %v1190 = vadd.f32 0.0, %v1189
        %v1191 = vpop.f32.mrb[0].mxu0
        %v1192 = vpop.f32.mrb[0].mxu0
        %v1193 = vpop.f32.mrb[0].mxu0
        %1194 = vdwg.mxu0
        %1195 = vrot.lane.b32.xlu0 %v859, 112
        %v1196 = vpop.permute.xlu0 %1195
        %1197 = vrot.lane.b32.xlu0 %v860, 112
        %v1198 = vpop.permute.xlu0 %1197
        %1199 = vrot.lane.b32.xlu0 %v859, 80
        %v1200 = vpop.permute.xlu0 %1199
        %1201 = vrot.lane.b32.xlu0 %v860, 80
        %v1202 = vpop.permute.xlu0 %1201
        %v1204 = vsel %vm867, %v1196, 0
        %v1207 = vsel %vm867, %v1198, 0
        %v1210 = vsel %vm867, %v1200, 0
        %v1213 = vsel %vm867, %v1202, 0
        %1215 = vmatprep.subr.bf16.mxu0 0
        %1216 = vmatpush1.bf16.xpose.msra.mxu0 %v1210
        %1217 = vmatprep.subr.bf16.mxu0 0
        %1218 = vmatpush1.bf16.xpose.msra.mxu0 %v1213
        %1219 = vmatprep.subr.bf16.mxu0 0
        %1220 = vmatpush1.bf16.xpose.msra.mxu0 0
        %1221 = vmatprep.subr.bf16.mxu0 0
        %1222 = vmatpush1.bf16.xpose.msra.mxu0 0
        %1223 = vmatprep.subr.bf16.mxu0 0
        %1224 = vmatpush1.bf16.xpose.msra.mxu0 0
        %1225 = vmatprep.subr.bf16.mxu0 0
        %1226 = vmatpush1.bf16.xpose.msra.mxu0 0
        %1227 = vmatprep.subr.bf16.mxu0 0
        %1228 = vmatpush1.bf16.xpose.msra.mxu0 0
        %1229 = vmatprep.subr.bf16.mxu0 0
        %1230 = vmatpush1.bf16.xpose.msra.mxu0 0
        %1231 = vmatprep.subr.bf16.mxu0 0
        %1232 = vmatpush1.bf16.xpose.msra.mxu0 0
        %1233 = vmatprep.subr.bf16.mxu0 0
        %1234 = vmatpush1.bf16.xpose.msra.mxu0 0
        %1235 = vmatprep.subr.bf16.mxu0 0
        %1236 = vmatpush1.bf16.xpose.msra.mxu0 0
        %1237 = vmatprep.subr.bf16.mxu0 0
        %1238 = vmatpush1.bf16.xpose.msra.mxu0 0
        %1239 = vmatprep.subr.bf16.mxu0 0
        %1240 = vmatpush1.bf16.xpose.msra.mxu0 0
        %1241 = vmatprep.subr.bf16.mxu0 0
        %1242 = vmatpush1.bf16.xpose.msra.mxu0 0
        %1243 = vmatprep.subr.bf16.mxu0 0
        %1244 = vmatpush1.bf16.xpose.msra.mxu0 0
        %1245 = vmatprep.subr.bf16.mxu0 0
        %1246 = vmatpush1.bf16.xpose.msra.mxu0 0
        %1247 = vmatprep.mubr.bf16.mxu0 0
        %1248 = vmatmul.mubr.bf16.gmra.mrb[0].mxu0 %v1204
        %v1249 = vpop.f32.mrb[0].mxu0
        %v1250 = vadd.f32 0.0, %v1249
        %v1251 = vpop.f32.mrb[0].mxu0
        %v1252 = vpop.f32.mrb[0].mxu0
        %v1253 = vadd.f32 0.0, %v1252
        %v1254 = vpop.f32.mrb[0].mxu0
        %1255 = vmatprep.mubr.bf16.mxu0 0
        %1256 = vmatmul.mubr.bf16.gmra.mrb[0].mxu0 %v1207
        %v1257 = vpop.f32.mrb[0].mxu0
        %v1258 = vadd.f32 0.0, %v1257
        %v1259 = vpop.f32.mrb[0].mxu0
        %v1260 = vpop.f32.mrb[0].mxu0
        %v1261 = vpop.f32.mrb[0].mxu0
        %1262 = vdwg.mxu0
        %v1263 = vsel %vm928, %v1250, -inf
        %1264 = vmax.xlane.f32.xlu0 %v1263
        %v1265 = vpop.xlane.xlu0 %1264
        %v1266 = vsel %vm928, %v1253, -inf
        %1267 = vmax.xlane.f32.xlu0 %v1266
        %v1268 = vpop.xlane.xlu0 %1267
        %v1269 = vsel %vm935, %v1258, -inf
        %1270 = vmax.xlane.f32.xlu0 %v1269
        %v1271 = vpop.xlane.xlu0 %1270
        %v1272 = vsub.f32 %v1250, %v1265
        %v1273 = vsub.f32 %v1253, %v1268
        %v1274 = vsub.f32 %v1258, %v1271
        %v1275 = vmul.f32 %v1272, 1.442695
        %v1276 = vpow.pop %v1275
        %v1277 = vmul.f32 %v1273, 1.442695
        %v1278 = vpow.pop %v1277
        %v1279 = vmul.f32 %v1274, 1.442695
        %v1280 = vpow.pop %v1279
        %v1281 = vsel %vm928, %v1276, 0.0
        %1282 = vadd.xlane.f32.xlu0 %v1281
        %v1283 = vpop.xlane.xlu0 %1282
        %v1284 = vsel %vm928, %v1278, 0.0
        %1285 = vadd.xlane.f32.xlu0 %v1284
        %v1286 = vpop.xlane.xlu0 %1285
        %v1287 = vsel %vm935, %v1280, 0.0
        %1288 = vadd.xlane.f32.xlu0 %v1287
        %v1289 = vpop.xlane.xlu0 %1288
        %v1290 = vrcp.pop %v1283
        %v1291 = vrcp.pop %v1286
        %v1292 = vrcp.pop %v1289
        %v1293 = vmul.f32 %v1276, %v1290
        %v1294 = vmul.f32 %v1278, %v1291
        %v1295 = vmul.f32 %v1280, %v1292
        %v1296 = vpack.c.bf16 %v1294, %v1293
        %v1297 = vpack.c.bf16 %v1295, %v1295
        %1298 = vrot.lane.b32.xlu0 %v859, 48
        %v1299 = vpop.permute.xlu0 %1298
        %1300 = vrot.lane.b32.xlu0 %v860, 48
        %v1301 = vpop.permute.xlu0 %1300
        %v1304 = vsel %vm928, %v1296, 0
        %v1307 = vsel %vm928, %v1297, 0
        %v1310 = vand.u32 %v1301, %v978
        %1312 = vmatprep.subr.bf16.mxu0 0
        %1313 = vmatpush1.bf16.msra.mxu0 %v1299
        %1314 = vmatprep.subr.bf16.mxu0 0
        %1315 = vmatpush1.bf16.msra.mxu0 %v1310
        %1316 = vmatprep.subr.bf16.mxu0 0
        %1317 = vmatpush1.bf16.msra.mxu0 0
        %1318 = vmatprep.subr.bf16.mxu0 0
        %1319 = vmatpush1.bf16.msra.mxu0 0
        %1320 = vmatprep.subr.bf16.mxu0 0
        %1321 = vmatpush1.bf16.msra.mxu0 0
        %1322 = vmatprep.subr.bf16.mxu0 0
        %1323 = vmatpush1.bf16.msra.mxu0 0
        %1324 = vmatprep.subr.bf16.mxu0 0
        %1325 = vmatpush1.bf16.msra.mxu0 0
        %1326 = vmatprep.subr.bf16.mxu0 0
        %1327 = vmatpush1.bf16.msra.mxu0 0
        %1328 = vmatprep.subr.bf16.mxu0 0
        %1329 = vmatpush1.bf16.msra.mxu0 0
        %1330 = vmatprep.subr.bf16.mxu0 0
        %1331 = vmatpush1.bf16.msra.mxu0 0
        %1332 = vmatprep.subr.bf16.mxu0 0
        %1333 = vmatpush1.bf16.msra.mxu0 0
        %1334 = vmatprep.subr.bf16.mxu0 0
        %1335 = vmatpush1.bf16.msra.mxu0 0
        %1336 = vmatprep.subr.bf16.mxu0 0
        %1337 = vmatpush1.bf16.msra.mxu0 0
        %1338 = vmatprep.subr.bf16.mxu0 0
        %1339 = vmatpush1.bf16.msra.mxu0 0
        %1340 = vmatprep.subr.bf16.mxu0 0
        %1341 = vmatpush1.bf16.msra.mxu0 0
        %1342 = vmatprep.subr.bf16.mxu0 0
        %1343 = vmatpush1.bf16.msra.mxu0 0
        %1344 = vmatprep.mubr.bf16.mxu0 0
        %1345 = vmatmul.mubr.bf16.gmra.mrb[0].mxu0 %v1304
        %v1346 = vpop.f32.mrb[0].mxu0
        %v1347 = vadd.f32 0.0, %v1346
        %v1348 = vpop.f32.mrb[0].mxu0
        %v1349 = vpop.f32.mrb[0].mxu0
        %v1350 = vadd.f32 0.0, %v1349
        %v1351 = vpop.f32.mrb[0].mxu0
        %1352 = vmatprep.mubr.bf16.mxu0 0
        %1353 = vmatmul.mubr.bf16.gmra.mrb[0].mxu0 %v1307
        %v1354 = vpop.f32.mrb[0].mxu0
        %v1355 = vadd.f32 0.0, %v1354
        %v1356 = vpop.f32.mrb[0].mxu0
        %v1357 = vpop.f32.mrb[0].mxu0
        %v1358 = vpop.f32.mrb[0].mxu0
        %1359 = vdwg.mxu0
        %1360 = vrot.lane.b32.xlu0 %v859, 104
        %v1361 = vpop.permute.xlu0 %1360
        %1362 = vrot.lane.b32.xlu0 %v860, 104
        %v1363 = vpop.permute.xlu0 %1362
        %1364 = vrot.lane.b32.xlu0 %v859, 72
        %v1365 = vpop.permute.xlu0 %1364
        %1366 = vrot.lane.b32.xlu0 %v860, 72
        %v1367 = vpop.permute.xlu0 %1366
        %v1369 = vsel %vm867, %v1361, 0
        %v1372 = vsel %vm867, %v1363, 0
        %v1375 = vsel %vm867, %v1365, 0
        %v1378 = vsel %vm867, %v1367, 0
        %1380 = vmatprep.subr.bf16.mxu0 0
        %1381 = vmatpush1.bf16.xpose.msra.mxu0 %v1375
        %1382 = vmatprep.subr.bf16.mxu0 0
        %1383 = vmatpush1.bf16.xpose.msra.mxu0 %v1378
        %1384 = vmatprep.subr.bf16.mxu0 0
        %1385 = vmatpush1.bf16.xpose.msra.mxu0 0
        %1386 = vmatprep.subr.bf16.mxu0 0
        %1387 = vmatpush1.bf16.xpose.msra.mxu0 0
        %1388 = vmatprep.subr.bf16.mxu0 0
        %1389 = vmatpush1.bf16.xpose.msra.mxu0 0
        %1390 = vmatprep.subr.bf16.mxu0 0
        %1391 = vmatpush1.bf16.xpose.msra.mxu0 0
        %1392 = vmatprep.subr.bf16.mxu0 0
        %1393 = vmatpush1.bf16.xpose.msra.mxu0 0
        %1394 = vmatprep.subr.bf16.mxu0 0
        %1395 = vmatpush1.bf16.xpose.msra.mxu0 0
        %1396 = vmatprep.subr.bf16.mxu0 0
        %1397 = vmatpush1.bf16.xpose.msra.mxu0 0
        %1398 = vmatprep.subr.bf16.mxu0 0
        %1399 = vmatpush1.bf16.xpose.msra.mxu0 0
        %1400 = vmatprep.subr.bf16.mxu0 0
        %1401 = vmatpush1.bf16.xpose.msra.mxu0 0
        %1402 = vmatprep.subr.bf16.mxu0 0
        %1403 = vmatpush1.bf16.xpose.msra.mxu0 0
        %1404 = vmatprep.subr.bf16.mxu0 0
        %1405 = vmatpush1.bf16.xpose.msra.mxu0 0
        %1406 = vmatprep.subr.bf16.mxu0 0
        %1407 = vmatpush1.bf16.xpose.msra.mxu0 0
        %1408 = vmatprep.subr.bf16.mxu0 0
        %1409 = vmatpush1.bf16.xpose.msra.mxu0 0
        %1410 = vmatprep.subr.bf16.mxu0 0
        %1411 = vmatpush1.bf16.xpose.msra.mxu0 0
        %1412 = vmatprep.mubr.bf16.mxu0 0
        %1413 = vmatmul.mubr.bf16.gmra.mrb[0].mxu0 %v1369
        %v1414 = vpop.f32.mrb[0].mxu0
        %v1415 = vadd.f32 0.0, %v1414
        %v1416 = vpop.f32.mrb[0].mxu0
        %v1417 = vpop.f32.mrb[0].mxu0
        %v1418 = vadd.f32 0.0, %v1417
        %v1419 = vpop.f32.mrb[0].mxu0
        %1420 = vmatprep.mubr.bf16.mxu0 0
        %1421 = vmatmul.mubr.bf16.gmra.mrb[0].mxu0 %v1372
        %v1422 = vpop.f32.mrb[0].mxu0
        %v1423 = vadd.f32 0.0, %v1422
        %v1424 = vpop.f32.mrb[0].mxu0
        %v1425 = vpop.f32.mrb[0].mxu0
        %v1426 = vpop.f32.mrb[0].mxu0
        %1427 = vdwg.mxu0
        %v1428 = vsel %vm928, %v1415, -inf
        %1429 = vmax.xlane.f32.xlu0 %v1428
        %v1430 = vpop.xlane.xlu0 %1429
        %v1431 = vsel %vm928, %v1418, -inf
        %1432 = vmax.xlane.f32.xlu0 %v1431
        %v1433 = vpop.xlane.xlu0 %1432
        %v1434 = vsel %vm935, %v1423, -inf
        %1435 = vmax.xlane.f32.xlu0 %v1434
        %v1436 = vpop.xlane.xlu0 %1435
        %v1437 = vsub.f32 %v1415, %v1430
        %v1438 = vsub.f32 %v1418, %v1433
        %v1439 = vsub.f32 %v1423, %v1436
        %v1440 = vmul.f32 %v1437, 1.442695
        %v1441 = vpow.pop %v1440
        %v1442 = vmul.f32 %v1438, 1.442695
        %v1443 = vpow.pop %v1442
        %v1444 = vmul.f32 %v1439, 1.442695
        %v1445 = vpow.pop %v1444
        %v1446 = vsel %vm928, %v1441, 0.0
        %1447 = vadd.xlane.f32.xlu0 %v1446
        %v1448 = vpop.xlane.xlu0 %1447
        %v1449 = vsel %vm928, %v1443, 0.0
        %1450 = vadd.xlane.f32.xlu0 %v1449
        %v1451 = vpop.xlane.xlu0 %1450
        %v1452 = vsel %vm935, %v1445, 0.0
        %1453 = vadd.xlane.f32.xlu0 %v1452
        %v1454 = vpop.xlane.xlu0 %1453
        %v1455 = vrcp.pop %v1448
        %v1456 = vrcp.pop %v1451
        %v1457 = vrcp.pop %v1454
        %v1458 = vmul.f32 %v1441, %v1455
        %v1459 = vmul.f32 %v1443, %v1456
        %v1460 = vmul.f32 %v1445, %v1457
        %v1461 = vpack.c.bf16 %v1459, %v1458
        %v1462 = vpack.c.bf16 %v1460, %v1460
        %1463 = vrot.lane.b32.xlu0 %v859, 40
        %v1464 = vpop.permute.xlu0 %1463
        %1465 = vrot.lane.b32.xlu0 %v860, 40
        %v1466 = vpop.permute.xlu0 %1465
        %v1469 = vsel %vm928, %v1461, 0
        %v1472 = vsel %vm928, %v1462, 0
        %v1475 = vand.u32 %v1466, %v978
        %1477 = vmatprep.subr.bf16.mxu0 0
        %1478 = vmatpush1.bf16.msra.mxu0 %v1464
        %1479 = vmatprep.subr.bf16.mxu0 0
        %1480 = vmatpush1.bf16.msra.mxu0 %v1475
        %1481 = vmatprep.subr.bf16.mxu0 0
        %1482 = vmatpush1.bf16.msra.mxu0 0
        %1483 = vmatprep.subr.bf16.mxu0 0
        %1484 = vmatpush1.bf16.msra.mxu0 0
        %1485 = vmatprep.subr.bf16.mxu0 0
        %1486 = vmatpush1.bf16.msra.mxu0 0
        %1487 = vmatprep.subr.bf16.mxu0 0
        %1488 = vmatpush1.bf16.msra.mxu0 0
        %1489 = vmatprep.subr.bf16.mxu0 0
        %1490 = vmatpush1.bf16.msra.mxu0 0
        %1491 = vmatprep.subr.bf16.mxu0 0
        %1492 = vmatpush1.bf16.msra.mxu0 0
        %1493 = vmatprep.subr.bf16.mxu0 0
        %1494 = vmatpush1.bf16.msra.mxu0 0
        %1495 = vmatprep.subr.bf16.mxu0 0
        %1496 = vmatpush1.bf16.msra.mxu0 0
        %1497 = vmatprep.subr.bf16.mxu0 0
        %1498 = vmatpush1.bf16.msra.mxu0 0
        %1499 = vmatprep.subr.bf16.mxu0 0
        %1500 = vmatpush1.bf16.msra.mxu0 0
        %1501 = vmatprep.subr.bf16.mxu0 0
        %1502 = vmatpush1.bf16.msra.mxu0 0
        %1503 = vmatprep.subr.bf16.mxu0 0
        %1504 = vmatpush1.bf16.msra.mxu0 0
        %1505 = vmatprep.subr.bf16.mxu0 0
        %1506 = vmatpush1.bf16.msra.mxu0 0
        %1507 = vmatprep.subr.bf16.mxu0 0
        %1508 = vmatpush1.bf16.msra.mxu0 0
        %1509 = vmatprep.mubr.bf16.mxu0 0
        %1510 = vmatmul.mubr.bf16.gmra.mrb[0].mxu0 %v1469
        %v1511 = vpop.f32.mrb[0].mxu0
        %v1512 = vadd.f32 0.0, %v1511
        %v1513 = vpop.f32.mrb[0].mxu0
        %v1514 = vpop.f32.mrb[0].mxu0
        %v1515 = vadd.f32 0.0, %v1514
        %v1516 = vpop.f32.mrb[0].mxu0
        %1517 = vmatprep.mubr.bf16.mxu0 0
        %1518 = vmatmul.mubr.bf16.gmra.mrb[0].mxu0 %v1472
        %v1519 = vpop.f32.mrb[0].mxu0
        %v1520 = vadd.f32 0.0, %v1519
        %v1521 = vpop.f32.mrb[0].mxu0
        %v1522 = vpop.f32.mrb[0].mxu0
        %v1523 = vpop.f32.mrb[0].mxu0
        %1524 = vdwg.mxu0
        %1528 = vrot.lane.b32.xlu0 %v1182, 8
        %v1529 = vpop.permute.xlu0 %1528
        %1530 = vrot.lane.b32.xlu0 %v1185, 8
        %v1531 = vpop.permute.xlu0 %1530
        %1532 = vrot.lane.b32.xlu0 %v1190, 8
        %v1533 = vpop.permute.xlu0 %1532
        %1540 = vrot.lane.b32.xlu0 %v1347, 16
        %v1541 = vpop.permute.xlu0 %1540
        %1542 = vrot.lane.b32.xlu0 %v1350, 16
        %v1543 = vpop.permute.xlu0 %1542
        %1544 = vrot.lane.b32.xlu0 %v1355, 16
        %v1545 = vpop.permute.xlu0 %1544
        %1552 = vrot.lane.b32.xlu0 %v1512, 24
        %v1553 = vpop.permute.xlu0 %1552
        %1554 = vrot.lane.b32.xlu0 %v1515, 24
        %v1555 = vpop.permute.xlu0 %1554
        %1556 = vrot.lane.b32.xlu0 %v1520, 24
        %v1557 = vpop.permute.xlu0 %1556
        %v1561 = vsel %vm867, %v1017, %v1529
        %v1562 = vsel %vm867, %v1020, %v1531
        %v1563 = vsel %vm867, %v1025, %v1533
        %vm1564 = vcmask 130048
        %v1565 = vsel %vm1564, %v1561, %v1541
        %v1566 = vsel %vm1564, %v1562, %v1543
        %v1567 = vsel %vm1564, %v1563, %v1545
        %vm1568 = vcmask 195584
        %v1569 = vsel %vm1568, %v1565, %v1553
        %v1570 = vsel %vm1568, %v1566, %v1555
        %v1571 = vsel %vm1568, %v1567, %v1557
        %v1572 = vpack.c.bf16 %v1570, %v1569
        %v1573 = vpack.c.bf16 %v1571, %v1571
        %v1574 = vld [vmem:[%s683] sm:$0xf]
        %v1575 = vld [vmem:[%s683 + $0x4] sm:$0xf]
        %v1576 = vld [vmem:[%s683 + $0x8] sm:$0xf]
        %v1577 = vld [vmem:[%s683 + $0xc] sm:$0xf]
        %v1582 = vunpack.c.l.b16 %v1574
        %v1583 = vunpack.c.l.b16 %v1575
        %v1584 = vunpack.c.l.b16 %v1576
        %v1585 = vunpack.c.l.b16 %v1577
        %v1586 = vpack.c.b16 %v1583, %v1582
        %v1587 = vpack.c.b16 %v1585, %v1584
        %v1591 = vsel %vm727, %v1572, 0
        %v1594 = vsel %vm727, %v1573, 0
        %1596 = vmatprep.subr.bf16.mxu0 0
        %1597 = vmatpush1.bf16.msra.mxu0 %v1586
        %1598 = vmatprep.subr.bf16.mxu0 0
        %1599 = vmatpush1.bf16.msra.mxu0 %v1587
        %1600 = vmatprep.subr.bf16.mxu0 0
        %1601 = vmatpush1.bf16.msra.mxu0 0
        %1602 = vmatprep.subr.bf16.mxu0 0
        %1603 = vmatpush1.bf16.msra.mxu0 0
        %1604 = vmatprep.subr.bf16.mxu0 0
        %1605 = vmatpush1.bf16.msra.mxu0 0
        %1606 = vmatprep.subr.bf16.mxu0 0
        %1607 = vmatpush1.bf16.msra.mxu0 0
        %1608 = vmatprep.subr.bf16.mxu0 0
        %1609 = vmatpush1.bf16.msra.mxu0 0
        %1610 = vmatprep.subr.bf16.mxu0 0
        %1611 = vmatpush1.bf16.msra.mxu0 0
        %1612 = vmatprep.subr.bf16.mxu0 0
        %1613 = vmatpush1.bf16.msra.mxu0 0
        %1614 = vmatprep.subr.bf16.mxu0 0
        %1615 = vmatpush1.bf16.msra.mxu0 0
        %1616 = vmatprep.subr.bf16.mxu0 0
        %1617 = vmatpush1.bf16.msra.mxu0 0
        %1618 = vmatprep.subr.bf16.mxu0 0
        %1619 = vmatpush1.bf16.msra.mxu0 0
        %1620 = vmatprep.subr.bf16.mxu0 0
        %1621 = vmatpush1.bf16.msra.mxu0 0
        %1622 = vmatprep.subr.bf16.mxu0 0
        %1623 = vmatpush1.bf16.msra.mxu0 0
        %1624 = vmatprep.subr.bf16.mxu0 0
        %1625 = vmatpush1.bf16.msra.mxu0 0
        %1626 = vmatprep.subr.bf16.mxu0 0
        %1627 = vmatpush1.bf16.msra.mxu0 0
        %1628 = vmatprep.mubr.bf16.mxu0 0
        %1629 = vmatmul.mubr.bf16.gmra.mrb[0].mxu0 %v1591
        %v1630 = vpop.f32.mrb[0].mxu0
        %v1631 = vadd.f32 0.0, %v1630
        %v1632 = vpop.f32.mrb[0].mxu0
        %v1633 = vpop.f32.mrb[0].mxu0
        %v1634 = vadd.f32 0.0, %v1633
        %v1635 = vpop.f32.mrb[0].mxu0
        %1636 = vmatprep.mubr.bf16.mxu0 0
        %1637 = vmatmul.mubr.bf16.gmra.mrb[0].mxu0 %v1594
        %v1638 = vpop.f32.mrb[0].mxu0
        %v1639 = vadd.f32 0.0, %v1638
        %v1640 = vpop.f32.mrb[0].mxu0
        %v1641 = vpop.f32.mrb[0].mxu0
        %v1642 = vpop.f32.mrb[0].mxu0
        %1643 = vdwg.mxu0
        %v1644 = vadd.f32 %v722, %v1631
        %v1645 = vadd.f32 %v723, %v1634
        %v1646 = vadd.f32 %v724, %v1639
        %v1647 = vld [vmem:[%s686] sm:$0x1]
        %v1649 = vlaneseq
        %v1650 = vshrl.u32 %v1649, 7
        %v1651 = vsub.s32 0, %v1650
        %v1652 = vrot.slane %v1647, %v1651
        %v1654 = vadd.f32 %v1644, %v1652
        %v1655 = vadd.f32 %v1645, %v1652
        %v1656 = vadd.f32 %v1646, %v1652
        %v1657 = vld [vmem:[%s689] sm:$0x1]
        %v1658 = vld [vmem:[%s692] sm:$0x1]
        %v1659 = vsel %vm727, %v1654, 0.0
        %1660 = vadd.xlane.f32.xlu0 %v1659
        %v1661 = vpop.xlane.xlu0 %1660
        %v1662 = vsel %vm727, %v1655, 0.0
        %1663 = vadd.xlane.f32.xlu0 %v1662
        %v1664 = vpop.xlane.xlu0 %1663
        %v1665 = vsel %vm734, %v1656, 0.0
        %1666 = vadd.xlane.f32.xlu0 %v1665
        %v1667 = vpop.xlane.xlu0 %1666
        %v1668 = vmul.f32 %v1661, %v738
        %v1669 = vmul.f32 %v1664, %v738
        %v1670 = vmul.f32 %v1667, %v738
        %v1671 = vsub.f32 %v1654, %v1668
        %v1672 = vsub.f32 %v1655, %v1669
        %v1673 = vsub.f32 %v1656, %v1670
        %v1674 = vmul.f32 %v1671, %v1671
        %v1675 = vmul.f32 %v1672, %v1672
        %v1676 = vmul.f32 %v1673, %v1673
        %v1677 = vsel %vm727, %v1674, 0.0
        %1678 = vadd.xlane.f32.xlu0 %v1677
        %v1679 = vpop.xlane.xlu0 %1678
        %v1680 = vsel %vm727, %v1675, 0.0
        %1681 = vadd.xlane.f32.xlu0 %v1680
        %v1682 = vpop.xlane.xlu0 %1681
        %v1683 = vsel %vm734, %v1676, 0.0
        %1684 = vadd.xlane.f32.xlu0 %v1683
        %v1685 = vpop.xlane.xlu0 %1684
        %v1686 = vmul.f32 %v1679, %v738
        %v1687 = vmul.f32 %v1682, %v738
        %v1688 = vmul.f32 %v1685, %v738
        %v1689 = vadd.f32 %v1686, 1e-05
        %v1690 = vadd.f32 %v1687, 1e-05
        %v1691 = vadd.f32 %v1688, 1e-05
        %v1692 = vrsqrt.pop %v1689
        %v1693 = vrsqrt.pop %v1690
        %v1694 = vrsqrt.pop %v1691
        %v1695 = vmul.f32 %v1671, %v1692
        %v1696 = vmul.f32 %v1672, %v1693
        %v1697 = vmul.f32 %v1673, %v1694
        %v1699 = vlaneseq
        %v1700 = vshrl.u32 %v1699, 7
        %v1701 = vsub.s32 0, %v1700
        %v1702 = vrot.slane %v1657, %v1701
        %v1704 = vmul.f32 %v1695, %v1702
        %v1705 = vmul.f32 %v1696, %v1702
        %v1706 = vmul.f32 %v1697, %v1702
        %v1708 = vlaneseq
        %v1709 = vshrl.u32 %v1708, 7
        %v1710 = vsub.s32 0, %v1709
        %v1711 = vrot.slane %v1658, %v1710
        %v1713 = vadd.f32 %v1704, %v1711
        %v1714 = vadd.f32 %v1705, %v1711
        %v1715 = vadd.f32 %v1706, %v1711
        %v1716 = vpack.c.bf16 %v1714, %v1713
        %v1717 = vpack.c.bf16 %v1715, %v1715
        %v1718 = vld [vmem:[%s697] sm:$0xf]
        %v1719 = vld [vmem:[%s697 + $0x4] sm:$0xf]
        %v1720 = vld [vmem:[%s697 + $0x8] sm:$0xf]
        %v1721 = vld [vmem:[%s697 + $0xc] sm:$0xf]
        %v1722 = vld [vmem:[%s700] sm:$0x1]
        %v1724 = vlaneseq
        %v1725 = vshrl.u32 %v1724, 7
        %v1726 = vsub.s32 0, %v1725
        %v1727 = vrot.slane %v1722, %v1726
        %v1733 = vunpack.c.l.b16 %v1718
        %v1734 = vunpack.c.l.b16 %v1719
        %v1735 = vunpack.c.l.b16 %v1720
        %v1736 = vunpack.c.l.b16 %v1721
        %v1737 = vpack.c.b16 %v1734, %v1733
        %v1738 = vpack.c.b16 %v1736, %v1735
        %v1742 = vsel %vm727, %v1716, 0
        %v1745 = vsel %vm727, %v1717, 0
        %1747 = vmatprep.subr.bf16.mxu0 0
        %1748 = vmatpush1.bf16.msra.mxu0 %v1737
        %1749 = vmatprep.subr.bf16.mxu0 0
        %1750 = vmatpush1.bf16.msra.mxu0 %v1738
        %1751 = vmatprep.subr.bf16.mxu0 0
        %1752 = vmatpush1.bf16.msra.mxu0 0
        %1753 = vmatprep.subr.bf16.mxu0 0
        %1754 = vmatpush1.bf16.msra.mxu0 0
        %1755 = vmatprep.subr.bf16.mxu0 0
        %1756 = vmatpush1.bf16.msra.mxu0 0
        %1757 = vmatprep.subr.bf16.mxu0 0
        %1758 = vmatpush1.bf16.msra.mxu0 0
        %1759 = vmatprep.subr.bf16.mxu0 0
        %1760 = vmatpush1.bf16.msra.mxu0 0
        %1761 = vmatprep.subr.bf16.mxu0 0
        %1762 = vmatpush1.bf16.msra.mxu0 0
        %1763 = vmatprep.subr.bf16.mxu0 0
        %1764 = vmatpush1.bf16.msra.mxu0 0
        %1765 = vmatprep.subr.bf16.mxu0 0
        %1766 = vmatpush1.bf16.msra.mxu0 0
        %1767 = vmatprep.subr.bf16.mxu0 0
        %1768 = vmatpush1.bf16.msra.mxu0 0
        %1769 = vmatprep.subr.bf16.mxu0 0
        %1770 = vmatpush1.bf16.msra.mxu0 0
        %1771 = vmatprep.subr.bf16.mxu0 0
        %1772 = vmatpush1.bf16.msra.mxu0 0
        %1773 = vmatprep.subr.bf16.mxu0 0
        %1774 = vmatpush1.bf16.msra.mxu0 0
        %1775 = vmatprep.subr.bf16.mxu0 0
        %1776 = vmatpush1.bf16.msra.mxu0 0
        %1777 = vmatprep.subr.bf16.mxu0 0
        %1778 = vmatpush1.bf16.msra.mxu0 0
        %1779 = vmatprep.mubr.bf16.mxu0 0
        %1780 = vmatmul.mubr.bf16.gmra.mrb[0].mxu0 %v1742
        %v1781 = vpop.f32.mrb[0].mxu0
        %v1782 = vadd.f32 %v1727, %v1781
        %v1783 = vpop.f32.mrb[0].mxu0
        %v1784 = vpop.f32.mrb[0].mxu0
        %v1785 = vadd.f32 %v1727, %v1784
        %v1786 = vpop.f32.mrb[0].mxu0
        %1787 = vmatprep.mubr.bf16.mxu0 0
        %1788 = vmatmul.mubr.bf16.gmra.mrb[0].mxu0 %v1745
        %v1789 = vpop.f32.mrb[0].mxu0
        %v1790 = vadd.f32 %v1727, %v1789
        %v1791 = vpop.f32.mrb[0].mxu0
        %v1792 = vpop.f32.mrb[0].mxu0
        %v1793 = vpop.f32.mrb[0].mxu0
        %1794 = vdwg.mxu0
        %v1795 = vmul.f32 %v1782, 0.5
        %v1796 = vmul.f32 %v1785, 0.5
        %v1797 = vmul.f32 %v1790, 0.5
        %v1798 = vmul.f32 %v1782, 0.044715
        %v1799 = vmul.f32 %v1785, 0.044715
        %v1800 = vmul.f32 %v1790, 0.044715
        %v1801 = vmul.f32 %v1798, %v1782
        %v1802 = vmul.f32 %v1799, %v1785
        %v1803 = vmul.f32 %v1800, %v1790
        %v1804 = vmul.f32 %v1801, %v1782
        %v1805 = vmul.f32 %v1802, %v1785
        %v1806 = vmul.f32 %v1803, %v1790
        %v1807 = vadd.f32 %v1782, %v1804
        %v1808 = vadd.f32 %v1785, %v1805
        %v1809 = vadd.f32 %v1790, %v1806
        %v1810 = vmul.f32 %v1807, 0.7978846
        %v1811 = vmul.f32 %v1808, 0.7978846
        %v1812 = vmul.f32 %v1809, 0.7978846
        %v1813 = vtanh.pop %v1810
        %v1814 = vtanh.pop %v1811
        %v1815 = vtanh.pop %v1812
        %v1816 = vadd.f32 %v1813, 1.0
        %v1817 = vadd.f32 %v1814, 1.0
        %v1818 = vadd.f32 %v1815, 1.0
        %v1819 = vmul.f32 %v1795, %v1816
        %v1820 = vmul.f32 %v1796, %v1817
        %v1821 = vmul.f32 %v1797, %v1818
        %v1822 = vpack.c.bf16 %v1820, %v1819
        %v1823 = vpack.c.bf16 %v1821, %v1821
        %v1824 = vld [vmem:[%s705] sm:$0xf]
        %v1825 = vld [vmem:[%s705 + $0x4] sm:$0xf]
        %v1826 = vld [vmem:[%s705 + $0x8] sm:$0xf]
        %v1827 = vld [vmem:[%s705 + $0xc] sm:$0xf]
        %v1828 = vld [vmem:[%s705 + $0x10] sm:$0xf]
        %v1829 = vld [vmem:[%s705 + $0x14] sm:$0xf]
        %v1830 = vld [vmem:[%s705 + $0x18] sm:$0xf]
        %v1831 = vld [vmem:[%s705 + $0x1c] sm:$0xf]
        %v1840 = vunpack.c.l.b16 %v1824
        %v1841 = vunpack.c.l.b16 %v1825
        %v1842 = vunpack.c.l.b16 %v1826
        %v1843 = vunpack.c.l.b16 %v1827
        %v1844 = vunpack.c.l.b16 %v1828
        %v1845 = vunpack.c.l.b16 %v1829
        %v1846 = vunpack.c.l.b16 %v1830
        %v1847 = vunpack.c.l.b16 %v1831
        %v1848 = vpack.c.b16 %v1841, %v1840
        %v1849 = vpack.c.b16 %v1843, %v1842
        %v1850 = vpack.c.b16 %v1845, %v1844
        %v1851 = vpack.c.b16 %v1847, %v1846
        %vm1856 = vcmask 523264
        %v1858 = vsel %vm1856, %v1822, 0
        %v1861 = vsel %vm1856, %v1823, 0
        %1863 = vmatprep.subr.bf16.mxu0 0
        %1864 = vmatpush1.bf16.msra.mxu0 %v1848
        %1865 = vmatprep.subr.bf16.mxu0 0
        %1866 = vmatpush1.bf16.msra.mxu0 %v1849
        %1867 = vmatprep.subr.bf16.mxu0 0
        %1868 = vmatpush1.bf16.msra.mxu0 %v1850
        %1869 = vmatprep.subr.bf16.mxu0 0
        %1870 = vmatpush1.bf16.msra.mxu0 %v1851
        %1871 = vmatprep.subr.bf16.mxu0 0
        %1872 = vmatpush1.bf16.msra.mxu0 0
        %1873 = vmatprep.subr.bf16.mxu0 0
        %1874 = vmatpush1.bf16.msra.mxu0 0
        %1875 = vmatprep.subr.bf16.mxu0 0
        %1876 = vmatpush1.bf16.msra.mxu0 0
        %1877 = vmatprep.subr.bf16.mxu0 0
        %1878 = vmatpush1.bf16.msra.mxu0 0
        %1879 = vmatprep.subr.bf16.mxu0 0
        %1880 = vmatpush1.bf16.msra.mxu0 0
        %1881 = vmatprep.subr.bf16.mxu0 0
        %1882 = vmatpush1.bf16.msra.mxu0 0
        %1883 = vmatprep.subr.bf16.mxu0 0
        %1884 = vmatpush1.bf16.msra.mxu0 0
        %1885 = vmatprep.subr.bf16.mxu0 0
        %1886 = vmatpush1.bf16.msra.mxu0 0
        %1887 = vmatprep.subr.bf16.mxu0 0
        %1888 = vmatpush1.bf16.msra.mxu0 0
        %1889 = vmatprep.subr.bf16.mxu0 0
        %1890 = vmatpush1.bf16.msra.mxu0 0
        %1891 = vmatprep.subr.bf16.mxu0 0
        %1892 = vmatpush1.bf16.msra.mxu0 0
        %1893 = vmatprep.subr.bf16.mxu0 0
        %1894 = vmatpush1.bf16.msra.mxu0 0
        %1895 = vmatprep.mubr.bf16.mxu0 0
        %1896 = vmatmul.mubr.bf16.gmra.mrb[0].mxu0 %v1858
        %v1897 = vpop.f32.mrb[0].mxu0
        %v1898 = vadd.f32 0.0, %v1897
        %v1899 = vpop.f32.mrb[0].mxu0
        %v1900 = vpop.f32.mrb[0].mxu0
        %v1901 = vadd.f32 0.0, %v1900
        %v1902 = vpop.f32.mrb[0].mxu0
        %1903 = vmatprep.mubr.bf16.mxu0 0
        %1904 = vmatmul.mubr.bf16.gmra.mrb[0].mxu0 %v1861
        %v1905 = vpop.f32.mrb[0].mxu0
        %v1906 = vadd.f32 0.0, %v1905
        %v1907 = vpop.f32.mrb[0].mxu0
        %v1908 = vpop.f32.mrb[0].mxu0
        %v1909 = vpop.f32.mrb[0].mxu0
        %1910 = vdwg.mxu0
        %v1911 = vadd.f32 %v1654, %v1898
        %v1912 = vadd.f32 %v1655, %v1901
        %v1913 = vadd.f32 %v1656, %v1906
        %v1914 = vld [vmem:[%s708] sm:$0x1]
        %v1916 = vlaneseq
        %v1917 = vshrl.u32 %v1916, 7
        %v1918 = vsub.s32 0, %v1917
        %v1919 = vrot.slane %v1914, %v1918
        %v1921 = vadd.f32 %v1911, %v1919
        %v1922 = vadd.f32 %v1912, %v1919
        %v1923 = vadd.f32 %v1913, %v1919
        %1924 = vst.msk [vmem:[#allocation2] sm:$0xff] %vm727, %v1921
        %1925 = vst.msk [vmem:[#allocation2 + $0x8] sm:$0xff] %vm727, %v1922
        %1926 = vst.msk [vmem:[#allocation2 + $0x10] sm:$0x1] %vm734, %v1923
        %p1927 = scmp.eq.s32.totalorder %s35, 1
        // Predicated region
        $region89: #{tpu_custom_call.1} parent=83 // pred_check
          %p1928 = pneg %p1927
        $region90: #{tpu_custom_call.1} parent=83 // pred_check_branch
          %1930 = sbr.rel (%p1928) target = $region92
        $region91: #{tpu_custom_call.1} parent=83 // pred_region
          %v1931 = vld [vmem:[#allocation2] sm:$0xff]
          %v1932 = vld [vmem:[%s12] sm:$0x1]
          %v1933 = vld [vmem:[%s13] sm:$0x1]
          %v1934 = vsel %vm734, %v1931, 0.0
          %1935 = vadd.xlane.f32.xlu0 %v1934
          %v1936 = vpop.xlane.xlu0 %1935
          %v1937 = vmul.f32 %v1936, %v738
          %v1938 = vsub.f32 %v1931, %v1937
          %v1939 = vmul.f32 %v1938, %v1938
          %v1940 = vsel %vm734, %v1939, 0.0
          %1941 = vadd.xlane.f32.xlu0 %v1940
          %v1942 = vpop.xlane.xlu0 %1941
          %v1943 = vmul.f32 %v1942, %v738
          %v1944 = vadd.f32 %v1943, 1e-05
          %v1945 = vrsqrt.pop %v1944
          %v1946 = vmul.f32 %v1938, %v1945
          %v1947 = vmul.f32 %v1946, %v1932
          %v1948 = vadd.f32 %v1947, %v1933
          %v1949 = vpack.c.bf16 %v1948, %v1948
          %v1950 = vld [vmem:[%s14] sm:$0xf]
          %v1951 = vld [vmem:[%s14 + $0x4] sm:$0xf]
          %v1952 = vld [vmem:[%s14 + $0x8] sm:$0xf]
          %v1953 = vld [vmem:[%s14 + $0xc] sm:$0xf]
          %v1954 = vld [vmem:[%s15] sm:$0x1]
          %v1959 = vunpack.c.l.b16 %v1950
          %v1960 = vunpack.c.l.b16 %v1951
          %v1961 = vunpack.c.l.b16 %v1952
          %v1962 = vunpack.c.l.b16 %v1953
          %v1963 = vpack.c.b16 %v1960, %v1959
          %v1964 = vpack.c.b16 %v1962, %v1961
          %v1968 = vsel %vm727, %v1949, 0
          %1970 = vmatprep.subr.bf16.mxu0 0
          %1971 = vmatpush1.bf16.msra.mxu0 %v1963
          %1972 = vmatprep.subr.bf16.mxu0 0
          %1973 = vmatpush1.bf16.msra.mxu0 %v1964
          %1974 = vmatprep.subr.bf16.mxu0 0
          %1975 = vmatpush1.bf16.msra.mxu0 0
          %1976 = vmatprep.subr.bf16.mxu0 0
          %1977 = vmatpush1.bf16.msra.mxu0 0
          %1978 = vmatprep.subr.bf16.mxu0 0
          %1979 = vmatpush1.bf16.msra.mxu0 0
          %1980 = vmatprep.subr.bf16.mxu0 0
          %1981 = vmatpush1.bf16.msra.mxu0 0
          %1982 = vmatprep.subr.bf16.mxu0 0
          %1983 = vmatpush1.bf16.msra.mxu0 0
          %1984 = vmatprep.subr.bf16.mxu0 0
          %1985 = vmatpush1.bf16.msra.mxu0 0
          %1986 = vmatprep.subr.bf16.mxu0 0
          %1987 = vmatpush1.bf16.msra.mxu0 0
          %1988 = vmatprep.subr.bf16.mxu0 0
          %1989 = vmatpush1.bf16.msra.mxu0 0
          %1990 = vmatprep.subr.bf16.mxu0 0
          %1991 = vmatpush1.bf16.msra.mxu0 0
          %1992 = vmatprep.subr.bf16.mxu0 0
          %1993 = vmatpush1.bf16.msra.mxu0 0
          %1994 = vmatprep.subr.bf16.mxu0 0
          %1995 = vmatpush1.bf16.msra.mxu0 0
          %1996 = vmatprep.subr.bf16.mxu0 0
          %1997 = vmatpush1.bf16.msra.mxu0 0
          %1998 = vmatprep.subr.bf16.mxu0 0
          %1999 = vmatpush1.bf16.msra.mxu0 0
          %2000 = vmatprep.subr.bf16.mxu0 0
          %2001 = vmatpush1.bf16.msra.mxu0 0
          %2002 = vmatprep.mubr.bf16.mxu0 0
          %2003 = vmatmul.mubr.bf16.gmra.mrb[0].mxu0 %v1968
          %v2004 = vpop.f32.mrb[0].mxu0
          %v2005 = vadd.f32 %v1954, %v2004
          %v2006 = vpop.f32.mrb[0].mxu0
          %v2007 = vpop.f32.mrb[0].mxu0
          %v2008 = vpop.f32.mrb[0].mxu0
          %2009 = vdwg.mxu0
          %2010 = vst [vmem:[%s662] sm:$0x1] %v2005
        $region92: #{tpu_custom_call.1} parent=83 // pred_fallthru
          _
        %s2011 = sand.u32 %s446, 1
        %s2012 = scalar_lea.sflag [#allocation4], %s2011
        %s2013 = sand.u32 %s446, 1
        %s2014 = scalar_lea.vmem [#allocation3], %s2013
        // Predicated region
        $region93: #{tpu_custom_call.1} parent=83 // pred_check
          %p2015 = pneg %p456
        $region94: #{tpu_custom_call.1} parent=83 // pred_check_branch
          %2017 = sbr.rel (%p2015) target = $region96
        $region95: #{tpu_custom_call.1} parent=83 // pred_region
          %s2019 = ssub.s32 16, 16
          %2020 = vsyncadd %s2012, %s2019
          %s2021 = smul.addr %s34, 16
          %s2022 = scalar_lea.hbm %s16, %s2021
          %s2024 = sshll.u32 %s2014, 4
          %s2025 = int_to_ptr.vmem [resolvable:$true] %s2024
          %2027 = dma.vmem_to_hbm [thread:$0]  %s2025, 16, %s2022, %s2012
        $region96: #{tpu_custom_call.1} parent=83 // pred_fallthru
          _
      $region84: #{tpu_custom_call.1} parent=5 // pred_fallthru
        _
      %p2028 = scmp.le.s32.totalorder 2, %s25
      // Predicated region
      $region97: #{tpu_custom_call.1} parent=5 // pred_check
        %p2029 = pneg %p2028
      $region98: #{tpu_custom_call.1} parent=5 // pred_check_branch
        %2031 = sbr.rel (%p2029) target = $region100
      $region99: #{tpu_custom_call.1} parent=5 // pred_region
        %s2032 = ssub.s32 %s25, 2
        // Predicated region
        $region101: #{tpu_custom_call.1} parent=99 // pred_check
          %p2033 = pneg %p462
        $region102: #{tpu_custom_call.1} parent=99 // pred_check_branch
          %2035 = sbr.rel (%p2033) target = $region104
        $region103: #{tpu_custom_call.1} parent=99 // pred_region
          %s2036 = sand.u32 %s447, 1
          %s2037 = scalar_lea.sflag [#allocation4], %s2036
          %s2038 = sand.u32 %s447, 1
          %s2039 = scalar_lea.vmem [#allocation3], %s2038
          %2040 = dma.done %s2037, 16
        $region104: #{tpu_custom_call.1} parent=99 // pred_fallthru
          _
      $region100: #{tpu_custom_call.1} parent=5 // pred_fallthru
        _
    $region6: #{tpu_custom_call.1} parent=1 // loop_footer
      %s29 = sadd.s32 1, %s25
    $region7: #{tpu_custom_call.1} parent=1 // loop_footer_branch
      %24 = sbr.rel target = $region3
    $region8: #{tpu_custom_call.1} parent=1 // loop_exit
      _
    %2041 = vsyncpa [#allocation4], 1
    %s2042 = scalar_lea.sflag [#allocation4], 1
    %2043 = vsyncpa %s2042, 1

</llo_original>
